<compile_context>
chip_gen: v7x
topology: tpu7x:2x2x1
jax: 0.10.0
libtpu: 0.0.40
codegen_flags: <defaults>
</compile_context>

<pallas_src>
import jax
import jax.numpy as jnp
from jax import lax
from jax.experimental import pallas as pl
from jax.experimental.pallas import tpu as pltpu


def u_hjb_kernel(xt_ref, wmat_ref, k_ref, w_ref, out_ref):
    xt = xt_ref[...]          # (dim, TB)      x^T tile, f32, lane-dense
    wmat = wmat_ref[...]      # (width, 2*dim) [a^2 | -2*a^2*(b+c)] (resident)
    k = k_ref[...]            # (width, 1)     sum_d a^2*(b+c)^2    (resident)
    w = w_ref[...]            # (1, width)                          (resident)

    # ||a_j * (x - c - b_j)||^2 via ONE fused K=2*dim MXU matmul:
    #   sq = [a^2 | -2 a^2 (b+c)] @ [x*x ; x] + sum_d a^2 (b+c)^2
    m = jnp.concatenate([xt * xt, xt], axis=0)                    # (2*dim, TB)
    sq = jnp.dot(wmat, m,
                 preferred_element_type=jnp.float32,
                 precision=lax.Precision.HIGHEST) + k             # (width, TB)
    sq = jnp.maximum(sq, 0.0)            # guard cancellation round-off
    g = jnp.exp(-jnp.sqrt(sq) * 0.5)     # (width, TB): EUP work, lane-dense

    # Width contraction -> (1, TB): unmasked lane-dense output store.
    out_ref[...] = jnp.dot(w, g,
                           preferred_element_type=jnp.float32,
                           precision=lax.Precision.HIGHEST
                           ).astype(out_ref.dtype)


def u_hjb_forward(x, a, b, c, w, *, block_b=512):
    """x: (B, dim); a, b: (dim, width); c: (dim,); w: (width,) -> (B,)."""
    B, dim = x.shape
    width = a.shape[1]

    # ---- grid-invariant parameter math, hoisted out of the kernel ----------
    a2 = (a * a).astype(jnp.float32)                      # (dim, width)
    bc = (b + c[:, None]).astype(jnp.float32)             # fold c: x-c-b = x-(b+c)
    wmat = jnp.concatenate([a2.T, -2.0 * (a2 * bc).T], axis=1)   # (width, 2*dim)
    kvec = jnp.sum(a2 * bc * bc, axis=0).reshape(width, 1)        # (width, 1)
    w2 = w.reshape(1, width).astype(jnp.float32)

    # Batch on the lane axis: transpose once in the wrapper (tiny: B x dim).
    xt = x.T.astype(jnp.float32)                          # (dim, B)

    # Lane-axis tile: multiple of 128 (or full extent when B <= 128).  Keep
    # >= 2 grid steps when possible so v7x can use both TensorCores; cap at
    # block_b to amortize per-step overhead without wasting VMEM.
    if B <= 128:
        blk = B
    else:
        blk = max(128, (min(block_b, B // 2) // 128) * 128)
    n_blocks = pl.cdiv(B, blk)

    out = pl.pallas_call(
        u_hjb_kernel,
        out_shape=jax.ShapeDtypeStruct((1, B), jnp.float32),
        grid=(n_blocks,),
        in_specs=[
            pl.BlockSpec((dim, blk), lambda i: (0, i)),        # x^T tile
            pl.BlockSpec((width, 2 * dim), lambda i: (0, 0)),  # fused weight
            pl.BlockSpec((width, 1), lambda i: (0, 0)),        # constant term
            pl.BlockSpec((1, width), lambda i: (0, 0)),        # w
        ],
        out_specs=pl.BlockSpec((1, blk), lambda i: (0, i)),    # lane-dense row
        compiler_params=pltpu.CompilerParams(
            dimension_semantics=("parallel",)),                # megacore-shardable
    )(xt, wmat, kvec, w2)
    return out[0].astype(x.dtype)


def reference_forward(x, a, b, c, w):
    """Plain-JAX reference mirroring the PyTorch forward exactly."""
    t = a[None, :, :] * (x[:, :, None] - c[None, :, None] - b[None, :, :])
    nrm = jnp.sqrt(jnp.sum(t * t, axis=1))       # vector_norm over dim=-2
    g = jnp.exp(-nrm / 2.0)
    return g @ w


if __name__ == "__main__":
    # Module defaults: dim=8, width=50.  Batch chosen so the grid has two
    # steps with a ragged (partially masked) last block: 200 -> 2 x 128.
    B, DIM, WIDTH = 200, 8, 50

    root = jax.random.PRNGKey(0)
    kx, kc, kb, ka, kw = jax.random.split(root, 5)
    x = jax.random.normal(kx, (B, DIM), jnp.float32)
    c = jax.random.normal(kc, (DIM,), jnp.float32)
    b = jax.random.normal(kb, (DIM, WIDTH), jnp.float32)
    a = jax.random.normal(ka, (DIM, WIDTH), jnp.float32)
    w = jax.random.normal(kw, (WIDTH,), jnp.float32)

    out = jax.block_until_ready(u_hjb_forward(x, a, b, c, w))
    ref = jax.block_until_ready(reference_forward(x, a, b, c, w))

    assert out.shape == (B,) and out.dtype == jnp.float32
    max_err = float(jnp.max(jnp.abs(out - ref)))
    assert jnp.allclose(out, ref, rtol=1e-3, atol=1e-3), \
        f"max abs err {max_err}"

    print("KERNEL_OK")
</pallas_src>

<mosaic_0001>
module attributes {stable_mosaic.version = 11 : i64} {
  func.func @u_hjb_kernel(%arg0: i32, %arg1: memref<8x128xf32, #tpu.memory_space<vmem>>, %arg2: memref<50x16xf32, #tpu.memory_space<vmem>>, %arg3: memref<50x1xf32, #tpu.memory_space<vmem>>, %arg4: memref<1x50xf32, #tpu.memory_space<vmem>>, %arg5: memref<1x128xf32, #tpu.memory_space<vmem>>) attributes {dimension_semantics = [#tpu.dimension_semantics<parallel>], iteration_bounds = array<i64: 2>, scalar_prefetch = 0 : i64, scratch_operands = 0 : i64, tpu.core_type = #tpu.core_type<tc>, window_params = [{transform_indices = @transform_0, window_bounds = array<i64: 8, 128>}, {pipeline_mode = #tpu.pipeline_mode<synchronous>, transform_indices = @transform_1, window_bounds = array<i64: 50, 16>}, {pipeline_mode = #tpu.pipeline_mode<synchronous>, transform_indices = @transform_2, window_bounds = array<i64: 50, 1>}, {pipeline_mode = #tpu.pipeline_mode<synchronous>, transform_indices = @transform_3, window_bounds = array<i64: 1, 50>}, {transform_indices = @transform_4, window_bounds = array<i64: 1, 128>}]} {
    %c0 = arith.constant 0 : index
    %c0_0 = arith.constant 0 : index
    %0 = vector.load %arg1[%c0, %c0_0] : memref<8x128xf32, #tpu.memory_space<vmem>>, vector<8x128xf32>
    %c0_1 = arith.constant 0 : index
    %c0_2 = arith.constant 0 : index
    %1 = vector.load %arg2[%c0_1, %c0_2] : memref<50x16xf32, #tpu.memory_space<vmem>>, vector<50x16xf32>
    %c0_3 = arith.constant 0 : index
    %c0_4 = arith.constant 0 : index
    %2 = vector.load %arg3[%c0_3, %c0_4] : memref<50x1xf32, #tpu.memory_space<vmem>>, vector<50x1xf32>
    %c0_5 = arith.constant 0 : index
    %c0_6 = arith.constant 0 : index
    %3 = vector.load %arg4[%c0_5, %c0_6] : memref<1x50xf32, #tpu.memory_space<vmem>>, vector<1x50xf32>
    %4 = arith.mulf %0, %0 : vector<8x128xf32>
    %5 = tpu.concatenate %4, %0 in 0 : vector<8x128xf32>, vector<8x128xf32> -> vector<16x128xf32>
    %cst = arith.constant dense<0.000000e+00> : vector<50x128xf32>
    %6 = tpu.matmul %1, %5, %cst {dimension_numbers = #tpu.dot_dimension_numbers<[1], [0], [0], [1], [0, 0, 1, 1], [], []>, precision = #tpu.contract_precision<fp32>} : vector<50x16xf32>, vector<16x128xf32>, vector<50x128xf32> -> vector<50x128xf32>
    %7 = vector.broadcast %2 : vector<50x1xf32> to vector<50x128xf32>
    %8 = arith.addf %6, %7 : vector<50x128xf32>
    %cst_7 = arith.constant 0.000000e+00 : f32
    %9 = vector.broadcast %cst_7 : f32 to vector<50x128xf32>
    %10 = arith.maximumf %8, %9 : vector<50x128xf32>
    %11 = math.sqrt %10 : vector<50x128xf32>
    %cst_8 = arith.constant 0.000000e+00 : f32
    %12 = vector.broadcast %cst_8 : f32 to vector<50x128xf32>
    %13 = arith.subf %12, %11 : vector<50x128xf32>
    %cst_9 = arith.constant 5.000000e-01 : f32
    %14 = vector.broadcast %cst_9 : f32 to vector<50x128xf32>
    %15 = arith.mulf %13, %14 : vector<50x128xf32>
    %16 = math.exp %15 : vector<50x128xf32>
    %cst_10 = arith.constant dense<0.000000e+00> : vector<1x128xf32>
    %17 = tpu.matmul %3, %16, %cst_10 {dimension_numbers = #tpu.dot_dimension_numbers<[1], [0], [0], [1], [0, 0, 1, 1], [], []>, precision = #tpu.contract_precision<fp32>} : vector<1x50xf32>, vector<50x128xf32>, vector<1x128xf32> -> vector<1x128xf32>
    %c0_11 = arith.constant 0 : index
    %c0_12 = arith.constant 0 : index
    %18 = vector.load %arg5[%c0_11, %c0_12] : memref<1x128xf32, #tpu.memory_space<vmem>>, vector<1x128xf32>
    tpu.vector_store %arg5[%c0_11, %c0_12], %17 {strides = array<i32>} : memref<1x128xf32, #tpu.memory_space<vmem>>, vector<1x128xf32>,
    return
  }
  func.func @transform_0(%arg0: i32) -> (i32, i32) {
    %c0_i32 = arith.constant 0 : i32
    %c0_i32_0 = arith.constant 0 : i32
    return %c0_i32, %arg0 : i32, i32
  }
  func.func @transform_1(%arg0: i32) -> (i32, i32) {
    %c0_i32 = arith.constant 0 : i32
    %c0_i32_0 = arith.constant 0 : i32
    %c0_i32_1 = arith.constant 0 : i32
    return %c0_i32, %c0_i32_0 : i32, i32
  }
  func.func @transform_2(%arg0: i32) -> (i32, i32) {
    %c0_i32 = arith.constant 0 : i32
    %c0_i32_0 = arith.constant 0 : i32
    %c0_i32_1 = arith.constant 0 : i32
    return %c0_i32, %c0_i32_0 : i32, i32
  }
  func.func @transform_3(%arg0: i32) -> (i32, i32) {
    %c0_i32 = arith.constant 0 : i32
    %c0_i32_0 = arith.constant 0 : i32
    %c0_i32_1 = arith.constant 0 : i32
    return %c0_i32, %c0_i32_0 : i32, i32
  }
  func.func @transform_4(%arg0: i32) -> (i32, i32) {
    %c0_i32 = arith.constant 0 : i32
    %c0_i32_0 = arith.constant 0 : i32
    return %c0_i32, %arg0 : i32, i32
  }
}

</mosaic_0001>

<llo_original>
// kernel: tpu_custom_call.1
$region0: #{tpu_custom_call.1}
  #allocation0 [shape = 'u32[]', space=smem, size = 0x4, offset = 0x4, fixed_abs, tag = 'smem constant byte address 0x4 - core index']
  #allocation1 [shape = 'u32[144,128]{1,0:T(1,128)}', space=vmem, size = 0x12000, scoped, tag = 'internal scratch']
  %s0 = inlined_call_operand.vmem [shape: f32[8,200], index: 0, kind: input, shape index: {}]
  %s1 = inlined_call_operand.vmem [shape: f32[50,16], index: 1, kind: input, shape index: {}]
  %s2 = inlined_call_operand.vmem [shape: f32[50,1], index: 2, kind: input, shape index: {}]
  %s3 = inlined_call_operand.vmem [shape: f32[1,50], index: 3, kind: input, shape index: {}]
  %s4 = inlined_call_operand.hbm [shape: f32[1,200], index: 4, kind: output, shape index: {}]
  %s5 = sld [smem:[#allocation0]]
  $region49: #{tpu_custom_call.1} parent=0
    _
  %s7 = ssub.s32 1, %s5
  %s8 = scalar_select 0, %s7, %s5
  $region1: #{tpu_custom_call.1} parent=0
    #allocation2 [shape = 'u8[1024]{0}', space=vmem, size = 0x400, scoped, tag = 'output window, operand 0']
    #allocation3 [shape = 's32[2]{0}', space=sflag, size = 0x8, scoped, tag = 'scoped memory for tpu_custom_call.1']
    %9 = vsyncpa [#allocation3], 0
    %s10 = scalar_lea.sflag [#allocation3], 1
    %11 = vsyncpa %s10, 0
    loop: start=0, step=1, limit=4
    $region2: #{tpu_custom_call.1} parent=1 // loop_pre_header
      _
    $region3: #{tpu_custom_call.1} parent=1 // loop_header
      %s13 = sphi 0, %s17
      %p14 = scmp.ge.s32.totalorder %s13, 4
      %s23 = sphi 0, %s25
      %s26 = sphi 0, %s23
      %s27 = sphi 0, %s26
      %s43 = sphi 0, %s27
      %s47 = sphi 0, %s47
      %s49 = sphi 0, %s47
      %s50 = sphi 0, %s49
      %s64 = sphi 0, %s50
      %s68 = sphi 0, %s68
      %s70 = sphi 0, %s68
      %s71 = sphi 0, %s70
      %s85 = sphi 0, %s71
      %s89 = sphi 0, %s89
      %s91 = sphi 0, %s89
      %s92 = sphi 0, %s91
      %s106 = sphi 0, %s92
      %s112 = sphi 0, %s114
      %s115 = sphi 0, %s112
      %s116 = sphi 0, %s115
      %s132 = sphi 0, %s116
    $region4: #{tpu_custom_call.1} parent=1 // loop_header_branch
      %16 = sbr.rel (%p14) target = $region8
    $region5: #{tpu_custom_call.1} parent=1 // loop_body
      %s18 = ssub.s32 %s13, 1
      %s19 = ssub.s32 %s13, 2
      %s20 = sadd.s32 %s13, 1
      %s21 = ssub.s32 %s13, %s20
      %p22 = scmp.eq.s32.totalorder %s21, 0
      %s24 = sadd.s32 %s23, 1
      %s25 = scalar_select %p22, %s23, %s24
      %p28 = pneg %p22
      %p29 = scmp.eq.s32.totalorder %s13, 1
      %p30 = por %p28, %p29
      %p31 = scmp.ne.s32.totalorder %s23, %s26
      %p32 = scmp.eq.s32.totalorder %s13, 0
      %p33 = por %p31, %p32
      %p34 = scmp.ne.s32.totalorder %s23, %s26
      %p35 = scmp.eq.s32.totalorder %s18, 1
      %p36 = por %p34, %p35
      %p37 = scmp.ne.s32.totalorder %s26, %s27
      %p38 = scmp.eq.s32.totalorder %s18, 0
      %p39 = por %p37, %p38
      %p40 = scmp.ne.s32.totalorder %s26, %s27
      %p41 = scmp.eq.s32.totalorder %s19, 1
      %p42 = por %p40, %p41
      %p44 = scmp.ne.s32.totalorder %s27, %s43
      %p45 = scmp.eq.s32.totalorder %s19, 0
      %p46 = por %p44, %p45
      %s48 = sadd.s32 %s47, 1
      %p51 = scmp.eq.s32.totalorder %s13, 1
      %p52 = scmp.ne.s32.totalorder %s47, %s49
      %p53 = scmp.eq.s32.totalorder %s13, 0
      %p54 = por %p52, %p53
      %p55 = scmp.ne.s32.totalorder %s47, %s49
      %p56 = scmp.eq.s32.totalorder %s18, 1
      %p57 = por %p55, %p56
      %p58 = scmp.ne.s32.totalorder %s49, %s50
      %p59 = scmp.eq.s32.totalorder %s18, 0
      %p60 = por %p58, %p59
      %p61 = scmp.ne.s32.totalorder %s49, %s50
      %p62 = scmp.eq.s32.totalorder %s19, 1
      %p63 = por %p61, %p62
      %p65 = scmp.ne.s32.totalorder %s50, %s64
      %p66 = scmp.eq.s32.totalorder %s19, 0
      %p67 = por %p65, %p66
      %s69 = sadd.s32 %s68, 1
      %p72 = scmp.eq.s32.totalorder %s13, 1
      %p73 = scmp.ne.s32.totalorder %s68, %s70
      %p74 = scmp.eq.s32.totalorder %s13, 0
      %p75 = por %p73, %p74
      %p76 = scmp.ne.s32.totalorder %s68, %s70
      %p77 = scmp.eq.s32.totalorder %s18, 1
      %p78 = por %p76, %p77
      %p79 = scmp.ne.s32.totalorder %s70, %s71
      %p80 = scmp.eq.s32.totalorder %s18, 0
      %p81 = por %p79, %p80
      %p82 = scmp.ne.s32.totalorder %s70, %s71
      %p83 = scmp.eq.s32.totalorder %s19, 1
      %p84 = por %p82, %p83
      %p86 = scmp.ne.s32.totalorder %s71, %s85
      %p87 = scmp.eq.s32.totalorder %s19, 0
      %p88 = por %p86, %p87
      %s90 = sadd.s32 %s89, 1
      %p93 = scmp.eq.s32.totalorder %s13, 1
      %p94 = scmp.ne.s32.totalorder %s89, %s91
      %p95 = scmp.eq.s32.totalorder %s13, 0
      %p96 = por %p94, %p95
      %p97 = scmp.ne.s32.totalorder %s89, %s91
      %p98 = scmp.eq.s32.totalorder %s18, 1
      %p99 = por %p97, %p98
      %p100 = scmp.ne.s32.totalorder %s91, %s92
      %p101 = scmp.eq.s32.totalorder %s18, 0
      %p102 = por %p100, %p101
      %p103 = scmp.ne.s32.totalorder %s91, %s92
      %p104 = scmp.eq.s32.totalorder %s19, 1
      %p105 = por %p103, %p104
      %p107 = scmp.ne.s32.totalorder %s92, %s106
      %p108 = scmp.eq.s32.totalorder %s19, 0
      %p109 = por %p107, %p108
      %s110 = ssub.s32 %s13, %s20
      %p111 = scmp.eq.s32.totalorder %s110, 0
      %s113 = sadd.s32 %s112, 1
      %s114 = scalar_select %p111, %s112, %s113
      %p117 = pneg %p111
      %p118 = scmp.eq.s32.totalorder %s13, 1
      %p119 = por %p117, %p118
      %p120 = scmp.ne.s32.totalorder %s112, %s115
      %p121 = scmp.eq.s32.totalorder %s13, 0
      %p122 = por %p120, %p121
      %p123 = scmp.ne.s32.totalorder %s112, %s115
      %p124 = scmp.eq.s32.totalorder %s18, 1
      %p125 = por %p123, %p124
      %p126 = scmp.ne.s32.totalorder %s115, %s116
      %p127 = scmp.eq.s32.totalorder %s18, 0
      %p128 = por %p126, %p127
      %p129 = scmp.ne.s32.totalorder %s115, %s116
      %p130 = scmp.eq.s32.totalorder %s19, 1
      %p131 = por %p129, %p130
      %p133 = scmp.ne.s32.totalorder %s116, %s132
      %p134 = scmp.eq.s32.totalorder %s19, 0
      %p135 = por %p133, %p134
      %p136 = scmp.le.s32.totalorder 1, %s13
      %p137 = scmp.lt.s32.totalorder %s13, 3
      %p138 = pnand %p136, %p137
      %p139 = pneg %p138
      // Predicated region
      $region9: #{tpu_custom_call.1} parent=5 // pred_check
        _
      $region10: #{tpu_custom_call.1} parent=5 // pred_check_branch
        %141 = sbr.rel (%p138) target = $region12
      $region11: #{tpu_custom_call.1} parent=5 // pred_region
        %s142 = ssub.s32 %s13, 1
        // Predicated region
        $region13: #{tpu_custom_call.1} parent=11 // pred_check
          %p143 = pneg %p60
        $region14: #{tpu_custom_call.1} parent=11 // pred_check_branch
          %145 = sbr.rel (%p143) target = $region16
        $region15: #{tpu_custom_call.1} parent=11 // pred_region
          _
        $region16: #{tpu_custom_call.1} parent=11 // pred_fallthru
          _
        // Predicated region
        $region17: #{tpu_custom_call.1} parent=11 // pred_check
          %p146 = pneg %p81
        $region18: #{tpu_custom_call.1} parent=11 // pred_check_branch
          %148 = sbr.rel (%p146) target = $region20
        $region19: #{tpu_custom_call.1} parent=11 // pred_region
          _
        $region20: #{tpu_custom_call.1} parent=11 // pred_fallthru
          _
        // Predicated region
        $region21: #{tpu_custom_call.1} parent=11 // pred_check
          %p149 = pneg %p102
        $region22: #{tpu_custom_call.1} parent=11 // pred_check_branch
          %151 = sbr.rel (%p149) target = $region24
        $region23: #{tpu_custom_call.1} parent=11 // pred_region
          _
        $region24: #{tpu_custom_call.1} parent=11 // pred_fallthru
          _
      $region12: #{tpu_custom_call.1} parent=5 // pred_fallthru
        _
      %p152 = scmp.lt.s32.totalorder %s13, 2
      // Predicated region
      $region25: #{tpu_custom_call.1} parent=5 // pred_check
        %p153 = pneg %p152
      $region26: #{tpu_custom_call.1} parent=5 // pred_check_branch
        %155 = sbr.rel (%p153) target = $region28
      $region27: #{tpu_custom_call.1} parent=5 // pred_region
        // Predicated region
        $region29: #{tpu_custom_call.1} parent=27 // pred_check
          %p156 = pneg %p33
        $region30: #{tpu_custom_call.1} parent=27 // pred_check_branch
          %158 = sbr.rel (%p156) target = $region32
        $region31: #{tpu_custom_call.1} parent=27 // pred_region
          %p159 = scmp.lt.s32.totalorder %s13, 1
          %s160 = scalar_select %p159, %s13, 1
          %s161 = smul.addr %s160, 8
          %s162 = scalar_lea.vmem %s0, %s161
        $region32: #{tpu_custom_call.1} parent=27 // pred_fallthru
          _
      $region28: #{tpu_custom_call.1} parent=5 // pred_fallthru
        _
      %p163 = scmp.le.s32.totalorder 1, %s13
      %p164 = scmp.lt.s32.totalorder %s13, 3
      %p165 = pnand %p163, %p164
      %p166 = pneg %p165
      // Predicated region
      $region33: #{tpu_custom_call.1} parent=5 // pred_check
        _
      $region34: #{tpu_custom_call.1} parent=5 // pred_check_branch
        %168 = sbr.rel (%p165) target = $region36
      $region35: #{tpu_custom_call.1} parent=5 // pred_region
        %s169 = ssub.s32 %s13, 1
        %p170 = scmp.lt.s32.totalorder %s18, 1
        %s171 = scalar_select %p170, %s18, 1
        %s172 = smul.addr %s171, 8
        %s173 = scalar_lea.vmem %s0, %s172
        %p174 = pneg %p39
        %p175 = pneg %p36
        %p176 = pneg %p60
        %p177 = pneg %p57
        %p178 = pneg %p81
        %p179 = pneg %p78
        %p180 = pneg %p102
        %p181 = pneg %p99
        %p182 = pneg %p128
        %p183 = pneg %p125
        %s184 = sand.u32 %s115, 1
        %s185 = scalar_lea.sflag [#allocation3], %s184
        %s186 = sand.u32 %s115, 1
        %s187 = scalar_lea.vmem [#allocation2], %s186
        %p188 = scmp.lt.s32.totalorder %s18, 1
        %s189 = scalar_select %p188, %s18, 1
        %s190 = smul.addr %s189, 8
        %s191 = scalar_lea.vmem %s0, %s190
        %v192 = vld [vmem:[%s191] sm:$0xff]
        %v193 = vld [vmem:[%s1] sm:$0xff]
        %v194 = vld [vmem:[%s1 + $0x8] sm:$0xff]
        %v195 = vld [vmem:[%s1 + $0x10] sm:$0xff]
        %v196 = vld [vmem:[%s1 + $0x18] sm:$0xff]
        %v197 = vld [vmem:[%s1 + $0x20] sm:$0xff]
        %v198 = vld [vmem:[%s1 + $0x28] sm:$0xff]
        %v199 = vld [vmem:[%s1 + $0x30] sm:$0x3]
        %v200 = vld [vmem:[%s2] sm:$0xff]
        %v201 = vld [vmem:[%s2 + $0x8] sm:$0xff]
        %v202 = vld [vmem:[%s2 + $0x10] sm:$0xff]
        %v203 = vld [vmem:[%s2 + $0x18] sm:$0xff]
        %v204 = vld [vmem:[%s2 + $0x20] sm:$0xff]
        %v205 = vld [vmem:[%s2 + $0x28] sm:$0xff]
        %v206 = vld [vmem:[%s2 + $0x30] sm:$0x3]
        %v207 = vld [vmem:[%s3] sm:$0x1]
        %v208 = vmul.f32 %v192, %v192
        %210 = vset.pattern.permute.xlu0 0
        %211 = vperm.xlu0 %210, %v200
        %v212 = vpop.permute.xlu0 %211
        %215 = vset.pattern.permute.xlu0 0
        %216 = vperm.xlu0 %215, %v201
        %v217 = vpop.permute.xlu0 %216
        %220 = vset.pattern.permute.xlu0 0
        %221 = vperm.xlu0 %220, %v202
        %v222 = vpop.permute.xlu0 %221
        %225 = vset.pattern.permute.xlu0 0
        %226 = vperm.xlu0 %225, %v203
        %v227 = vpop.permute.xlu0 %226
        %230 = vset.pattern.permute.xlu0 0
        %231 = vperm.xlu0 %230, %v204
        %v232 = vpop.permute.xlu0 %231
        %235 = vset.pattern.permute.xlu0 0
        %236 = vperm.xlu0 %235, %v205
        %v237 = vpop.permute.xlu0 %236
        %240 = vset.pattern.permute.xlu0 0
        %241 = vperm.xlu0 %240, %v206
        %v242 = vpop.permute.xlu0 %241
        %vm244 = vcmask 130048
        %v246 = vsel %vm244, %v193, 0
        %v249 = vsel %vm244, %v194, 0
        %v252 = vsel %vm244, %v195, 0
        %v255 = vsel %vm244, %v196, 0
        %v258 = vsel %vm244, %v197, 0
        %v261 = vsel %vm244, %v198, 0
        %v264 = vsel %vm244, %v199, 0
        %266 = vmatprep.subr.mxu0 0.0
        %v267 = vand.u32 %v208, 4294901760
        %268 = vmatpush1.msra.mxu0 %v267
        %269 = vmatprep.subr.mxu0 0.0
        %v270 = vand.u32 %v192, 4294901760
        %271 = vmatpush1.msra.mxu0 %v270
        %272 = vmatprep.subr.mxu0 0.0
        %273 = vmatpush1.msra.mxu0 0.0
        %274 = vmatprep.subr.mxu0 0.0
        %275 = vmatpush1.msra.mxu0 0.0
        %276 = vmatprep.subr.mxu0 0.0
        %277 = vmatpush1.msra.mxu0 0.0
        %278 = vmatprep.subr.mxu0 0.0
        %279 = vmatpush1.msra.mxu0 0.0
        %280 = vmatprep.subr.mxu0 0.0
        %281 = vmatpush1.msra.mxu0 0.0
        %282 = vmatprep.subr.mxu0 0.0
        %283 = vmatpush1.msra.mxu0 0.0
        %284 = vmatprep.subr.mxu0 0.0
        %285 = vmatpush1.msra.mxu0 0.0
        %286 = vmatprep.subr.mxu0 0.0
        %287 = vmatpush1.msra.mxu0 0.0
        %288 = vmatprep.subr.mxu0 0.0
        %289 = vmatpush1.msra.mxu0 0.0
        %290 = vmatprep.subr.mxu0 0.0
        %291 = vmatpush1.msra.mxu0 0.0
        %292 = vmatprep.subr.mxu0 0.0
        %293 = vmatpush1.msra.mxu0 0.0
        %294 = vmatprep.subr.mxu0 0.0
        %295 = vmatpush1.msra.mxu0 0.0
        %296 = vmatprep.subr.mxu0 0.0
        %297 = vmatpush1.msra.mxu0 0.0
        %298 = vmatprep.subr.mxu0 0.0
        %299 = vmatpush1.msra.mxu0 0.0
        %300 = vmatprep.subr.mxu0 0.0
        %301 = vmatpush1.msra.mxu0 0.0
        %302 = vmatprep.subr.mxu0 0.0
        %303 = vmatpush1.msra.mxu0 0.0
        %304 = vmatprep.subr.mxu0 0.0
        %305 = vmatpush1.msra.mxu0 0.0
        %306 = vmatprep.subr.mxu0 0.0
        %307 = vmatpush1.msra.mxu0 0.0
        %308 = vmatprep.subr.mxu0 0.0
        %309 = vmatpush1.msra.mxu0 0.0
        %310 = vmatprep.subr.mxu0 0.0
        %311 = vmatpush1.msra.mxu0 0.0
        %312 = vmatprep.subr.mxu0 0.0
        %313 = vmatpush1.msra.mxu0 0.0
        %314 = vmatprep.subr.mxu0 0.0
        %315 = vmatpush1.msra.mxu0 0.0
        %316 = vmatprep.subr.mxu0 0.0
        %317 = vmatpush1.msra.mxu0 0.0
        %318 = vmatprep.subr.mxu0 0.0
        %319 = vmatpush1.msra.mxu0 0.0
        %320 = vmatprep.subr.mxu0 0.0
        %321 = vmatpush1.msra.mxu0 0.0
        %322 = vmatprep.subr.mxu0 0.0
        %323 = vmatpush1.msra.mxu0 0.0
        %324 = vmatprep.subr.mxu0 0.0
        %325 = vmatpush1.msra.mxu0 0.0
        %326 = vmatprep.subr.mxu0 0.0
        %327 = vmatpush1.msra.mxu0 0.0
        %328 = vmatprep.subr.mxu0 0.0
        %329 = vmatpush1.msra.mxu0 0.0
        %330 = vmatprep.subr.mxu0 0.0
        %331 = vmatpush1.msra.mxu0 0.0
        %332 = vmatprep.mubr.f32.mxu0 0.0
        %v333 = vand.u32 %v246, 4294901760
        %v334 = vsub.f32 %v246, %v333
        %v335 = vand.u32 %v334, 4294901760
        %v336 = vsub.f32 %v334, %v335
        %v337 = vand.u32 %v336, 4294901760
        %338 = vmatmul.mubr.f32.gmra.mrb[0].mxu0 %v337
        %v339 = vpop.f32.mrb[0].mxu0
        %v340 = vadd.f32 %v212, %v339
        %v341 = vpop.f32.mrb[0].mxu0
        %342 = vmatprep.mubr.f32.mxu0 0.0
        %v343 = vand.u32 %v249, 4294901760
        %v344 = vsub.f32 %v249, %v343
        %v345 = vand.u32 %v344, 4294901760
        %v346 = vsub.f32 %v344, %v345
        %v347 = vand.u32 %v346, 4294901760
        %348 = vmatmul.mubr.f32.gmra.mrb[0].mxu0 %v347
        %v349 = vpop.f32.mrb[0].mxu0
        %v350 = vadd.f32 %v217, %v349
        %v351 = vpop.f32.mrb[0].mxu0
        %352 = vmatprep.mubr.f32.mxu0 0.0
        %v353 = vand.u32 %v252, 4294901760
        %v354 = vsub.f32 %v252, %v353
        %v355 = vand.u32 %v354, 4294901760
        %v356 = vsub.f32 %v354, %v355
        %v357 = vand.u32 %v356, 4294901760
        %358 = vmatmul.mubr.f32.gmra.mrb[0].mxu0 %v357
        %v359 = vpop.f32.mrb[0].mxu0
        %v360 = vadd.f32 %v222, %v359
        %v361 = vpop.f32.mrb[0].mxu0
        %362 = vmatprep.mubr.f32.mxu0 0.0
        %v363 = vand.u32 %v255, 4294901760
        %v364 = vsub.f32 %v255, %v363
        %v365 = vand.u32 %v364, 4294901760
        %v366 = vsub.f32 %v364, %v365
        %v367 = vand.u32 %v366, 4294901760
        %368 = vmatmul.mubr.f32.gmra.mrb[0].mxu0 %v367
        %v369 = vpop.f32.mrb[0].mxu0
        %v370 = vadd.f32 %v227, %v369
        %v371 = vpop.f32.mrb[0].mxu0
        %372 = vmatprep.mubr.f32.mxu0 0.0
        %v373 = vand.u32 %v258, 4294901760
        %v374 = vsub.f32 %v258, %v373
        %v375 = vand.u32 %v374, 4294901760
        %v376 = vsub.f32 %v374, %v375
        %v377 = vand.u32 %v376, 4294901760
        %378 = vmatmul.mubr.f32.gmra.mrb[0].mxu0 %v377
        %v379 = vpop.f32.mrb[0].mxu0
        %v380 = vadd.f32 %v232, %v379
        %v381 = vpop.f32.mrb[0].mxu0
        %382 = vmatprep.mubr.f32.mxu0 0.0
        %v383 = vand.u32 %v261, 4294901760
        %v384 = vsub.f32 %v261, %v383
        %v385 = vand.u32 %v384, 4294901760
        %v386 = vsub.f32 %v384, %v385
        %v387 = vand.u32 %v386, 4294901760
        %388 = vmatmul.mubr.f32.gmra.mrb[0].mxu0 %v387
        %v389 = vpop.f32.mrb[0].mxu0
        %v390 = vadd.f32 %v237, %v389
        %v391 = vpop.f32.mrb[0].mxu0
        %392 = vmatprep.mubr.f32.mxu0 0.0
        %v393 = vand.u32 %v264, 4294901760
        %v394 = vsub.f32 %v264, %v393
        %v395 = vand.u32 %v394, 4294901760
        %v396 = vsub.f32 %v394, %v395
        %v397 = vand.u32 %v396, 4294901760
        %398 = vmatmul.mubr.f32.gmra.mrb[0].mxu0 %v397
        %v399 = vpop.f32.mrb[0].mxu0
        %v400 = vadd.f32 %v242, %v399
        %v401 = vpop.f32.mrb[0].mxu0
        %402 = vdwg.mxu0
        %403 = vmatprep.subr.mxu0 0.0
        %v404 = vand.u32 %v208, 4294901760
        %v405 = vsub.f32 %v208, %v404
        %v406 = vand.u32 %v405, 4294901760
        %v407 = vsub.f32 %v405, %v406
        %v408 = vand.u32 %v407, 4294901760
        %409 = vmatpush1.msra.mxu0 %v408
        %410 = vmatprep.subr.mxu0 0.0
        %v411 = vand.u32 %v192, 4294901760
        %v412 = vsub.f32 %v192, %v411
        %v413 = vand.u32 %v412, 4294901760
        %v414 = vsub.f32 %v412, %v413
        %v415 = vand.u32 %v414, 4294901760
        %416 = vmatpush1.msra.mxu0 %v415
        %417 = vmatprep.subr.mxu0 0.0
        %418 = vmatpush1.msra.mxu0 0.0
        %419 = vmatprep.subr.mxu0 0.0
        %420 = vmatpush1.msra.mxu0 0.0
        %421 = vmatprep.subr.mxu0 0.0
        %422 = vmatpush1.msra.mxu0 0.0
        %423 = vmatprep.subr.mxu0 0.0
        %424 = vmatpush1.msra.mxu0 0.0
        %425 = vmatprep.subr.mxu0 0.0
        %426 = vmatpush1.msra.mxu0 0.0
        %427 = vmatprep.subr.mxu0 0.0
        %428 = vmatpush1.msra.mxu0 0.0
        %429 = vmatprep.subr.mxu0 0.0
        %430 = vmatpush1.msra.mxu0 0.0
        %431 = vmatprep.subr.mxu0 0.0
        %432 = vmatpush1.msra.mxu0 0.0
        %433 = vmatprep.subr.mxu0 0.0
        %434 = vmatpush1.msra.mxu0 0.0
        %435 = vmatprep.subr.mxu0 0.0
        %436 = vmatpush1.msra.mxu0 0.0
        %437 = vmatprep.subr.mxu0 0.0
        %438 = vmatpush1.msra.mxu0 0.0
        %439 = vmatprep.subr.mxu0 0.0
        %440 = vmatpush1.msra.mxu0 0.0
        %441 = vmatprep.subr.mxu0 0.0
        %442 = vmatpush1.msra.mxu0 0.0
        %443 = vmatprep.subr.mxu0 0.0
        %444 = vmatpush1.msra.mxu0 0.0
        %445 = vmatprep.subr.mxu0 0.0
        %446 = vmatpush1.msra.mxu0 0.0
        %447 = vmatprep.subr.mxu0 0.0
        %448 = vmatpush1.msra.mxu0 0.0
        %449 = vmatprep.subr.mxu0 0.0
        %450 = vmatpush1.msra.mxu0 0.0
        %451 = vmatprep.subr.mxu0 0.0
        %452 = vmatpush1.msra.mxu0 0.0
        %453 = vmatprep.subr.mxu0 0.0
        %454 = vmatpush1.msra.mxu0 0.0
        %455 = vmatprep.subr.mxu0 0.0
        %456 = vmatpush1.msra.mxu0 0.0
        %457 = vmatprep.subr.mxu0 0.0
        %458 = vmatpush1.msra.mxu0 0.0
        %459 = vmatprep.subr.mxu0 0.0
        %460 = vmatpush1.msra.mxu0 0.0
        %461 = vmatprep.subr.mxu0 0.0
        %462 = vmatpush1.msra.mxu0 0.0
        %463 = vmatprep.subr.mxu0 0.0
        %464 = vmatpush1.msra.mxu0 0.0
        %465 = vmatprep.subr.mxu0 0.0
        %466 = vmatpush1.msra.mxu0 0.0
        %467 = vmatprep.subr.mxu0 0.0
        %468 = vmatpush1.msra.mxu0 0.0
        %469 = vmatprep.subr.mxu0 0.0
        %470 = vmatpush1.msra.mxu0 0.0
        %471 = vmatprep.subr.mxu0 0.0
        %472 = vmatpush1.msra.mxu0 0.0
        %473 = vmatprep.subr.mxu0 0.0
        %474 = vmatpush1.msra.mxu0 0.0
        %475 = vmatprep.subr.mxu0 0.0
        %476 = vmatpush1.msra.mxu0 0.0
        %477 = vmatprep.mubr.f32.mxu0 0.0
        %v478 = vand.u32 %v246, 4294901760
        %479 = vmatmul.mubr.f32.gmra.mrb[0].mxu0 %v478
        %v480 = vpop.f32.mrb[0].mxu0
        %v481 = vadd.f32 %v340, %v480
        %v482 = vpop.f32.mrb[0].mxu0
        %483 = vmatprep.mubr.f32.mxu0 0.0
        %v484 = vand.u32 %v249, 4294901760
        %485 = vmatmul.mubr.f32.gmra.mrb[0].mxu0 %v484
        %v486 = vpop.f32.mrb[0].mxu0
        %v487 = vadd.f32 %v350, %v486
        %v488 = vpop.f32.mrb[0].mxu0
        %489 = vmatprep.mubr.f32.mxu0 0.0
        %v490 = vand.u32 %v252, 4294901760
        %491 = vmatmul.mubr.f32.gmra.mrb[0].mxu0 %v490
        %v492 = vpop.f32.mrb[0].mxu0
        %v493 = vadd.f32 %v360, %v492
        %v494 = vpop.f32.mrb[0].mxu0
        %495 = vmatprep.mubr.f32.mxu0 0.0
        %v496 = vand.u32 %v255, 4294901760
        %497 = vmatmul.mubr.f32.gmra.mrb[0].mxu0 %v496
        %v498 = vpop.f32.mrb[0].mxu0
        %v499 = vadd.f32 %v370, %v498
        %v500 = vpop.f32.mrb[0].mxu0
        %501 = vmatprep.mubr.f32.mxu0 0.0
        %v502 = vand.u32 %v258, 4294901760
        %503 = vmatmul.mubr.f32.gmra.mrb[0].mxu0 %v502
        %v504 = vpop.f32.mrb[0].mxu0
        %v505 = vadd.f32 %v380, %v504
        %v506 = vpop.f32.mrb[0].mxu0
        %507 = vmatprep.mubr.f32.mxu0 0.0
        %v508 = vand.u32 %v261, 4294901760
        %509 = vmatmul.mubr.f32.gmra.mrb[0].mxu0 %v508
        %v510 = vpop.f32.mrb[0].mxu0
        %v511 = vadd.f32 %v390, %v510
        %v512 = vpop.f32.mrb[0].mxu0
        %513 = vmatprep.mubr.f32.mxu0 0.0
        %v514 = vand.u32 %v264, 4294901760
        %515 = vmatmul.mubr.f32.gmra.mrb[0].mxu0 %v514
        %v516 = vpop.f32.mrb[0].mxu0
        %v517 = vadd.f32 %v400, %v516
        %v518 = vpop.f32.mrb[0].mxu0
        %519 = vdwg.mxu0
        %520 = vmatprep.subr.mxu0 0.0
        %v521 = vand.u32 %v208, 4294901760
        %v522 = vsub.f32 %v208, %v521
        %523 = vmatpush1.msra.mxu0 %v522
        %524 = vmatprep.subr.mxu0 0.0
        %v525 = vand.u32 %v192, 4294901760
        %v526 = vsub.f32 %v192, %v525
        %527 = vmatpush1.msra.mxu0 %v526
        %528 = vmatprep.subr.mxu0 0.0
        %529 = vmatpush1.msra.mxu0 0.0
        %530 = vmatprep.subr.mxu0 0.0
        %531 = vmatpush1.msra.mxu0 0.0
        %532 = vmatprep.subr.mxu0 0.0
        %533 = vmatpush1.msra.mxu0 0.0
        %534 = vmatprep.subr.mxu0 0.0
        %535 = vmatpush1.msra.mxu0 0.0
        %536 = vmatprep.subr.mxu0 0.0
        %537 = vmatpush1.msra.mxu0 0.0
        %538 = vmatprep.subr.mxu0 0.0
        %539 = vmatpush1.msra.mxu0 0.0
        %540 = vmatprep.subr.mxu0 0.0
        %541 = vmatpush1.msra.mxu0 0.0
        %542 = vmatprep.subr.mxu0 0.0
        %543 = vmatpush1.msra.mxu0 0.0
        %544 = vmatprep.subr.mxu0 0.0
        %545 = vmatpush1.msra.mxu0 0.0
        %546 = vmatprep.subr.mxu0 0.0
        %547 = vmatpush1.msra.mxu0 0.0
        %548 = vmatprep.subr.mxu0 0.0
        %549 = vmatpush1.msra.mxu0 0.0
        %550 = vmatprep.subr.mxu0 0.0
        %551 = vmatpush1.msra.mxu0 0.0
        %552 = vmatprep.subr.mxu0 0.0
        %553 = vmatpush1.msra.mxu0 0.0
        %554 = vmatprep.subr.mxu0 0.0
        %555 = vmatpush1.msra.mxu0 0.0
        %556 = vmatprep.subr.mxu0 0.0
        %557 = vmatpush1.msra.mxu0 0.0
        %558 = vmatprep.subr.mxu0 0.0
        %559 = vmatpush1.msra.mxu0 0.0
        %560 = vmatprep.subr.mxu0 0.0
        %561 = vmatpush1.msra.mxu0 0.0
        %562 = vmatprep.subr.mxu0 0.0
        %563 = vmatpush1.msra.mxu0 0.0
        %564 = vmatprep.subr.mxu0 0.0
        %565 = vmatpush1.msra.mxu0 0.0
        %566 = vmatprep.subr.mxu0 0.0
        %567 = vmatpush1.msra.mxu0 0.0
        %568 = vmatprep.subr.mxu0 0.0
        %569 = vmatpush1.msra.mxu0 0.0
        %570 = vmatprep.subr.mxu0 0.0
        %571 = vmatpush1.msra.mxu0 0.0
        %572 = vmatprep.subr.mxu0 0.0
        %573 = vmatpush1.msra.mxu0 0.0
        %574 = vmatprep.subr.mxu0 0.0
        %575 = vmatpush1.msra.mxu0 0.0
        %576 = vmatprep.subr.mxu0 0.0
        %577 = vmatpush1.msra.mxu0 0.0
        %578 = vmatprep.subr.mxu0 0.0
        %579 = vmatpush1.msra.mxu0 0.0
        %580 = vmatprep.subr.mxu0 0.0
        %581 = vmatpush1.msra.mxu0 0.0
        %582 = vmatprep.subr.mxu0 0.0
        %583 = vmatpush1.msra.mxu0 0.0
        %584 = vmatprep.subr.mxu0 0.0
        %585 = vmatpush1.msra.mxu0 0.0
        %586 = vmatprep.subr.mxu0 0.0
        %587 = vmatpush1.msra.mxu0 0.0
        %588 = vmatprep.mubr.f32.mxu0 0.0
        %v589 = vand.u32 %v246, 4294901760
        %v590 = vsub.f32 %v246, %v589
        %591 = vmatmul.mubr.f32.gmra.mrb[0].mxu0 %v590
        %v592 = vpop.f32.mrb[0].mxu0
        %v593 = vadd.f32 %v481, %v592
        %v594 = vpop.f32.mrb[0].mxu0
        %595 = vmatprep.mubr.f32.mxu0 0.0
        %v596 = vand.u32 %v249, 4294901760
        %v597 = vsub.f32 %v249, %v596
        %598 = vmatmul.mubr.f32.gmra.mrb[0].mxu0 %v597
        %v599 = vpop.f32.mrb[0].mxu0
        %v600 = vadd.f32 %v487, %v599
        %v601 = vpop.f32.mrb[0].mxu0
        %602 = vmatprep.mubr.f32.mxu0 0.0
        %v603 = vand.u32 %v252, 4294901760
        %v604 = vsub.f32 %v252, %v603
        %605 = vmatmul.mubr.f32.gmra.mrb[0].mxu0 %v604
        %v606 = vpop.f32.mrb[0].mxu0
        %v607 = vadd.f32 %v493, %v606
        %v608 = vpop.f32.mrb[0].mxu0
        %609 = vmatprep.mubr.f32.mxu0 0.0
        %v610 = vand.u32 %v255, 4294901760
        %v611 = vsub.f32 %v255, %v610
        %612 = vmatmul.mubr.f32.gmra.mrb[0].mxu0 %v611
        %v613 = vpop.f32.mrb[0].mxu0
        %v614 = vadd.f32 %v499, %v613
        %v615 = vpop.f32.mrb[0].mxu0
        %616 = vmatprep.mubr.f32.mxu0 0.0
        %v617 = vand.u32 %v258, 4294901760
        %v618 = vsub.f32 %v258, %v617
        %619 = vmatmul.mubr.f32.gmra.mrb[0].mxu0 %v618
        %v620 = vpop.f32.mrb[0].mxu0
        %v621 = vadd.f32 %v505, %v620
        %v622 = vpop.f32.mrb[0].mxu0
        %623 = vmatprep.mubr.f32.mxu0 0.0
        %v624 = vand.u32 %v261, 4294901760
        %v625 = vsub.f32 %v261, %v624
        %626 = vmatmul.mubr.f32.gmra.mrb[0].mxu0 %v625
        %v627 = vpop.f32.mrb[0].mxu0
        %v628 = vadd.f32 %v511, %v627
        %v629 = vpop.f32.mrb[0].mxu0
        %630 = vmatprep.mubr.f32.mxu0 0.0
        %v631 = vand.u32 %v264, 4294901760
        %v632 = vsub.f32 %v264, %v631
        %633 = vmatmul.mubr.f32.gmra.mrb[0].mxu0 %v632
        %v634 = vpop.f32.mrb[0].mxu0
        %v635 = vadd.f32 %v517, %v634
        %v636 = vpop.f32.mrb[0].mxu0
        %637 = vdwg.mxu0
        %638 = vmatprep.subr.mxu0 0.0
        %v639 = vand.u32 %v208, 4294901760
        %640 = vmatpush1.msra.mxu0 %v639
        %641 = vmatprep.subr.mxu0 0.0
        %v642 = vand.u32 %v192, 4294901760
        %643 = vmatpush1.msra.mxu0 %v642
        %644 = vmatprep.subr.mxu0 0.0
        %645 = vmatpush1.msra.mxu0 0.0
        %646 = vmatprep.subr.mxu0 0.0
        %647 = vmatpush1.msra.mxu0 0.0
        %648 = vmatprep.subr.mxu0 0.0
        %649 = vmatpush1.msra.mxu0 0.0
        %650 = vmatprep.subr.mxu0 0.0
        %651 = vmatpush1.msra.mxu0 0.0
        %652 = vmatprep.subr.mxu0 0.0
        %653 = vmatpush1.msra.mxu0 0.0
        %654 = vmatprep.subr.mxu0 0.0
        %655 = vmatpush1.msra.mxu0 0.0
        %656 = vmatprep.subr.mxu0 0.0
        %657 = vmatpush1.msra.mxu0 0.0
        %658 = vmatprep.subr.mxu0 0.0
        %659 = vmatpush1.msra.mxu0 0.0
        %660 = vmatprep.subr.mxu0 0.0
        %661 = vmatpush1.msra.mxu0 0.0
        %662 = vmatprep.subr.mxu0 0.0
        %663 = vmatpush1.msra.mxu0 0.0
        %664 = vmatprep.subr.mxu0 0.0
        %665 = vmatpush1.msra.mxu0 0.0
        %666 = vmatprep.subr.mxu0 0.0
        %667 = vmatpush1.msra.mxu0 0.0
        %668 = vmatprep.subr.mxu0 0.0
        %669 = vmatpush1.msra.mxu0 0.0
        %670 = vmatprep.subr.mxu0 0.0
        %671 = vmatpush1.msra.mxu0 0.0
        %672 = vmatprep.subr.mxu0 0.0
        %673 = vmatpush1.msra.mxu0 0.0
        %674 = vmatprep.subr.mxu0 0.0
        %675 = vmatpush1.msra.mxu0 0.0
        %676 = vmatprep.subr.mxu0 0.0
        %677 = vmatpush1.msra.mxu0 0.0
        %678 = vmatprep.subr.mxu0 0.0
        %679 = vmatpush1.msra.mxu0 0.0
        %680 = vmatprep.subr.mxu0 0.0
        %681 = vmatpush1.msra.mxu0 0.0
        %682 = vmatprep.subr.mxu0 0.0
        %683 = vmatpush1.msra.mxu0 0.0
        %684 = vmatprep.subr.mxu0 0.0
        %685 = vmatpush1.msra.mxu0 0.0
        %686 = vmatprep.subr.mxu0 0.0
        %687 = vmatpush1.msra.mxu0 0.0
        %688 = vmatprep.subr.mxu0 0.0
        %689 = vmatpush1.msra.mxu0 0.0
        %690 = vmatprep.subr.mxu0 0.0
        %691 = vmatpush1.msra.mxu0 0.0
        %692 = vmatprep.subr.mxu0 0.0
        %693 = vmatpush1.msra.mxu0 0.0
        %694 = vmatprep.subr.mxu0 0.0
        %695 = vmatpush1.msra.mxu0 0.0
        %696 = vmatprep.subr.mxu0 0.0
        %697 = vmatpush1.msra.mxu0 0.0
        %698 = vmatprep.subr.mxu0 0.0
        %699 = vmatpush1.msra.mxu0 0.0
        %700 = vmatprep.subr.mxu0 0.0
        %701 = vmatpush1.msra.mxu0 0.0
        %702 = vmatprep.subr.mxu0 0.0
        %703 = vmatpush1.msra.mxu0 0.0
        %704 = vmatprep.mubr.f32.mxu0 0.0
        %v705 = vand.u32 %v246, 4294901760
        %v706 = vsub.f32 %v246, %v705
        %v707 = vand.u32 %v706, 4294901760
        %708 = vmatmul.mubr.f32.gmra.mrb[0].mxu0 %v707
        %v709 = vpop.f32.mrb[0].mxu0
        %v710 = vadd.f32 %v593, %v709
        %v711 = vpop.f32.mrb[0].mxu0
        %712 = vmatprep.mubr.f32.mxu0 0.0
        %v713 = vand.u32 %v249, 4294901760
        %v714 = vsub.f32 %v249, %v713
        %v715 = vand.u32 %v714, 4294901760
        %716 = vmatmul.mubr.f32.gmra.mrb[0].mxu0 %v715
        %v717 = vpop.f32.mrb[0].mxu0
        %v718 = vadd.f32 %v600, %v717
        %v719 = vpop.f32.mrb[0].mxu0
        %720 = vmatprep.mubr.f32.mxu0 0.0
        %v721 = vand.u32 %v252, 4294901760
        %v722 = vsub.f32 %v252, %v721
        %v723 = vand.u32 %v722, 4294901760
        %724 = vmatmul.mubr.f32.gmra.mrb[0].mxu0 %v723
        %v725 = vpop.f32.mrb[0].mxu0
        %v726 = vadd.f32 %v607, %v725
        %v727 = vpop.f32.mrb[0].mxu0
        %728 = vmatprep.mubr.f32.mxu0 0.0
        %v729 = vand.u32 %v255, 4294901760
        %v730 = vsub.f32 %v255, %v729
        %v731 = vand.u32 %v730, 4294901760
        %732 = vmatmul.mubr.f32.gmra.mrb[0].mxu0 %v731
        %v733 = vpop.f32.mrb[0].mxu0
        %v734 = vadd.f32 %v614, %v733
        %v735 = vpop.f32.mrb[0].mxu0
        %736 = vmatprep.mubr.f32.mxu0 0.0
        %v737 = vand.u32 %v258, 4294901760
        %v738 = vsub.f32 %v258, %v737
        %v739 = vand.u32 %v738, 4294901760
        %740 = vmatmul.mubr.f32.gmra.mrb[0].mxu0 %v739
        %v741 = vpop.f32.mrb[0].mxu0
        %v742 = vadd.f32 %v621, %v741
        %v743 = vpop.f32.mrb[0].mxu0
        %744 = vmatprep.mubr.f32.mxu0 0.0
        %v745 = vand.u32 %v261, 4294901760
        %v746 = vsub.f32 %v261, %v745
        %v747 = vand.u32 %v746, 4294901760
        %748 = vmatmul.mubr.f32.gmra.mrb[0].mxu0 %v747
        %v749 = vpop.f32.mrb[0].mxu0
        %v750 = vadd.f32 %v628, %v749
        %v751 = vpop.f32.mrb[0].mxu0
        %752 = vmatprep.mubr.f32.mxu0 0.0
        %v753 = vand.u32 %v264, 4294901760
        %v754 = vsub.f32 %v264, %v753
        %v755 = vand.u32 %v754, 4294901760
        %756 = vmatmul.mubr.f32.gmra.mrb[0].mxu0 %v755
        %v757 = vpop.f32.mrb[0].mxu0
        %v758 = vadd.f32 %v635, %v757
        %v759 = vpop.f32.mrb[0].mxu0
        %760 = vdwg.mxu0
        %761 = vmatprep.subr.mxu0 0.0
        %v762 = vand.u32 %v208, 4294901760
        %v763 = vsub.f32 %v208, %v762
        %v764 = vand.u32 %v763, 4294901760
        %765 = vmatpush1.msra.mxu0 %v764
        %766 = vmatprep.subr.mxu0 0.0
        %v767 = vand.u32 %v192, 4294901760
        %v768 = vsub.f32 %v192, %v767
        %v769 = vand.u32 %v768, 4294901760
        %770 = vmatpush1.msra.mxu0 %v769
        %771 = vmatprep.subr.mxu0 0.0
        %772 = vmatpush1.msra.mxu0 0.0
        %773 = vmatprep.subr.mxu0 0.0
        %774 = vmatpush1.msra.mxu0 0.0
        %775 = vmatprep.subr.mxu0 0.0
        %776 = vmatpush1.msra.mxu0 0.0
        %777 = vmatprep.subr.mxu0 0.0
        %778 = vmatpush1.msra.mxu0 0.0
        %779 = vmatprep.subr.mxu0 0.0
        %780 = vmatpush1.msra.mxu0 0.0
        %781 = vmatprep.subr.mxu0 0.0
        %782 = vmatpush1.msra.mxu0 0.0
        %783 = vmatprep.subr.mxu0 0.0
        %784 = vmatpush1.msra.mxu0 0.0
        %785 = vmatprep.subr.mxu0 0.0
        %786 = vmatpush1.msra.mxu0 0.0
        %787 = vmatprep.subr.mxu0 0.0
        %788 = vmatpush1.msra.mxu0 0.0
        %789 = vmatprep.subr.mxu0 0.0
        %790 = vmatpush1.msra.mxu0 0.0
        %791 = vmatprep.subr.mxu0 0.0
        %792 = vmatpush1.msra.mxu0 0.0
        %793 = vmatprep.subr.mxu0 0.0
        %794 = vmatpush1.msra.mxu0 0.0
        %795 = vmatprep.subr.mxu0 0.0
        %796 = vmatpush1.msra.mxu0 0.0
        %797 = vmatprep.subr.mxu0 0.0
        %798 = vmatpush1.msra.mxu0 0.0
        %799 = vmatprep.subr.mxu0 0.0
        %800 = vmatpush1.msra.mxu0 0.0
        %801 = vmatprep.subr.mxu0 0.0
        %802 = vmatpush1.msra.mxu0 0.0
        %803 = vmatprep.subr.mxu0 0.0
        %804 = vmatpush1.msra.mxu0 0.0
        %805 = vmatprep.subr.mxu0 0.0
        %806 = vmatpush1.msra.mxu0 0.0
        %807 = vmatprep.subr.mxu0 0.0
        %808 = vmatpush1.msra.mxu0 0.0
        %809 = vmatprep.subr.mxu0 0.0
        %810 = vmatpush1.msra.mxu0 0.0
        %811 = vmatprep.subr.mxu0 0.0
        %812 = vmatpush1.msra.mxu0 0.0
        %813 = vmatprep.subr.mxu0 0.0
        %814 = vmatpush1.msra.mxu0 0.0
        %815 = vmatprep.subr.mxu0 0.0
        %816 = vmatpush1.msra.mxu0 0.0
        %817 = vmatprep.subr.mxu0 0.0
        %818 = vmatpush1.msra.mxu0 0.0
        %819 = vmatprep.subr.mxu0 0.0
        %820 = vmatpush1.msra.mxu0 0.0
        %821 = vmatprep.subr.mxu0 0.0
        %822 = vmatpush1.msra.mxu0 0.0
        %823 = vmatprep.subr.mxu0 0.0
        %824 = vmatpush1.msra.mxu0 0.0
        %825 = vmatprep.subr.mxu0 0.0
        %826 = vmatpush1.msra.mxu0 0.0
        %827 = vmatprep.subr.mxu0 0.0
        %828 = vmatpush1.msra.mxu0 0.0
        %829 = vmatprep.subr.mxu0 0.0
        %830 = vmatpush1.msra.mxu0 0.0
        %831 = vmatprep.mubr.f32.mxu0 0.0
        %v832 = vand.u32 %v246, 4294901760
        %833 = vmatmul.mubr.f32.gmra.mrb[0].mxu0 %v832
        %v834 = vpop.f32.mrb[0].mxu0
        %v835 = vadd.f32 %v710, %v834
        %v836 = vpop.f32.mrb[0].mxu0
        %837 = vmatprep.mubr.f32.mxu0 0.0
        %v838 = vand.u32 %v249, 4294901760
        %839 = vmatmul.mubr.f32.gmra.mrb[0].mxu0 %v838
        %v840 = vpop.f32.mrb[0].mxu0
        %v841 = vadd.f32 %v718, %v840
        %v842 = vpop.f32.mrb[0].mxu0
        %843 = vmatprep.mubr.f32.mxu0 0.0
        %v844 = vand.u32 %v252, 4294901760
        %845 = vmatmul.mubr.f32.gmra.mrb[0].mxu0 %v844
        %v846 = vpop.f32.mrb[0].mxu0
        %v847 = vadd.f32 %v726, %v846
        %v848 = vpop.f32.mrb[0].mxu0
        %849 = vmatprep.mubr.f32.mxu0 0.0
        %v850 = vand.u32 %v255, 4294901760
        %851 = vmatmul.mubr.f32.gmra.mrb[0].mxu0 %v850
        %v852 = vpop.f32.mrb[0].mxu0
        %v853 = vadd.f32 %v734, %v852
        %v854 = vpop.f32.mrb[0].mxu0
        %855 = vmatprep.mubr.f32.mxu0 0.0
        %v856 = vand.u32 %v258, 4294901760
        %857 = vmatmul.mubr.f32.gmra.mrb[0].mxu0 %v856
        %v858 = vpop.f32.mrb[0].mxu0
        %v859 = vadd.f32 %v742, %v858
        %v860 = vpop.f32.mrb[0].mxu0
        %861 = vmatprep.mubr.f32.mxu0 0.0
        %v862 = vand.u32 %v261, 4294901760
        %863 = vmatmul.mubr.f32.gmra.mrb[0].mxu0 %v862
        %v864 = vpop.f32.mrb[0].mxu0
        %v865 = vadd.f32 %v750, %v864
        %v866 = vpop.f32.mrb[0].mxu0
        %867 = vmatprep.mubr.f32.mxu0 0.0
        %v868 = vand.u32 %v264, 4294901760
        %869 = vmatmul.mubr.f32.gmra.mrb[0].mxu0 %v868
        %v870 = vpop.f32.mrb[0].mxu0
        %v871 = vadd.f32 %v758, %v870
        %v872 = vpop.f32.mrb[0].mxu0
        %873 = vdwg.mxu0
        %874 = vmatprep.subr.mxu0 0.0
        %v875 = vand.u32 %v208, 4294901760
        %876 = vmatpush1.msra.mxu0 %v875
        %877 = vmatprep.subr.mxu0 0.0
        %v878 = vand.u32 %v192, 4294901760
        %879 = vmatpush1.msra.mxu0 %v878
        %880 = vmatprep.subr.mxu0 0.0
        %881 = vmatpush1.msra.mxu0 0.0
        %882 = vmatprep.subr.mxu0 0.0
        %883 = vmatpush1.msra.mxu0 0.0
        %884 = vmatprep.subr.mxu0 0.0
        %885 = vmatpush1.msra.mxu0 0.0
        %886 = vmatprep.subr.mxu0 0.0
        %887 = vmatpush1.msra.mxu0 0.0
        %888 = vmatprep.subr.mxu0 0.0
        %889 = vmatpush1.msra.mxu0 0.0
        %890 = vmatprep.subr.mxu0 0.0
        %891 = vmatpush1.msra.mxu0 0.0
        %892 = vmatprep.subr.mxu0 0.0
        %893 = vmatpush1.msra.mxu0 0.0
        %894 = vmatprep.subr.mxu0 0.0
        %895 = vmatpush1.msra.mxu0 0.0
        %896 = vmatprep.subr.mxu0 0.0
        %897 = vmatpush1.msra.mxu0 0.0
        %898 = vmatprep.subr.mxu0 0.0
        %899 = vmatpush1.msra.mxu0 0.0
        %900 = vmatprep.subr.mxu0 0.0
        %901 = vmatpush1.msra.mxu0 0.0
        %902 = vmatprep.subr.mxu0 0.0
        %903 = vmatpush1.msra.mxu0 0.0
        %904 = vmatprep.subr.mxu0 0.0
        %905 = vmatpush1.msra.mxu0 0.0
        %906 = vmatprep.subr.mxu0 0.0
        %907 = vmatpush1.msra.mxu0 0.0
        %908 = vmatprep.subr.mxu0 0.0
        %909 = vmatpush1.msra.mxu0 0.0
        %910 = vmatprep.subr.mxu0 0.0
        %911 = vmatpush1.msra.mxu0 0.0
        %912 = vmatprep.subr.mxu0 0.0
        %913 = vmatpush1.msra.mxu0 0.0
        %914 = vmatprep.subr.mxu0 0.0
        %915 = vmatpush1.msra.mxu0 0.0
        %916 = vmatprep.subr.mxu0 0.0
        %917 = vmatpush1.msra.mxu0 0.0
        %918 = vmatprep.subr.mxu0 0.0
        %919 = vmatpush1.msra.mxu0 0.0
        %920 = vmatprep.subr.mxu0 0.0
        %921 = vmatpush1.msra.mxu0 0.0
        %922 = vmatprep.subr.mxu0 0.0
        %923 = vmatpush1.msra.mxu0 0.0
        %924 = vmatprep.subr.mxu0 0.0
        %925 = vmatpush1.msra.mxu0 0.0
        %926 = vmatprep.subr.mxu0 0.0
        %927 = vmatpush1.msra.mxu0 0.0
        %928 = vmatprep.subr.mxu0 0.0
        %929 = vmatpush1.msra.mxu0 0.0
        %930 = vmatprep.subr.mxu0 0.0
        %931 = vmatpush1.msra.mxu0 0.0
        %932 = vmatprep.subr.mxu0 0.0
        %933 = vmatpush1.msra.mxu0 0.0
        %934 = vmatprep.subr.mxu0 0.0
        %935 = vmatpush1.msra.mxu0 0.0
        %936 = vmatprep.subr.mxu0 0.0
        %937 = vmatpush1.msra.mxu0 0.0
        %938 = vmatprep.subr.mxu0 0.0
        %939 = vmatpush1.msra.mxu0 0.0
        %940 = vmatprep.mubr.f32.mxu0 0.0
        %v941 = vand.u32 %v246, 4294901760
        %942 = vmatmul.mubr.f32.gmra.mrb[0].mxu0 %v941
        %v943 = vpop.f32.mrb[0].mxu0
        %v944 = vadd.f32 %v835, %v943
        %v945 = vpop.f32.mrb[0].mxu0
        %946 = vmatprep.mubr.f32.mxu0 0.0
        %v947 = vand.u32 %v249, 4294901760
        %948 = vmatmul.mubr.f32.gmra.mrb[0].mxu0 %v947
        %v949 = vpop.f32.mrb[0].mxu0
        %v950 = vadd.f32 %v841, %v949
        %v951 = vpop.f32.mrb[0].mxu0
        %952 = vmatprep.mubr.f32.mxu0 0.0
        %v953 = vand.u32 %v252, 4294901760
        %954 = vmatmul.mubr.f32.gmra.mrb[0].mxu0 %v953
        %v955 = vpop.f32.mrb[0].mxu0
        %v956 = vadd.f32 %v847, %v955
        %v957 = vpop.f32.mrb[0].mxu0
        %958 = vmatprep.mubr.f32.mxu0 0.0
        %v959 = vand.u32 %v255, 4294901760
        %960 = vmatmul.mubr.f32.gmra.mrb[0].mxu0 %v959
        %v961 = vpop.f32.mrb[0].mxu0
        %v962 = vadd.f32 %v853, %v961
        %v963 = vpop.f32.mrb[0].mxu0
        %964 = vmatprep.mubr.f32.mxu0 0.0
        %v965 = vand.u32 %v258, 4294901760
        %966 = vmatmul.mubr.f32.gmra.mrb[0].mxu0 %v965
        %v967 = vpop.f32.mrb[0].mxu0
        %v968 = vadd.f32 %v859, %v967
        %v969 = vpop.f32.mrb[0].mxu0
        %970 = vmatprep.mubr.f32.mxu0 0.0
        %v971 = vand.u32 %v261, 4294901760
        %972 = vmatmul.mubr.f32.gmra.mrb[0].mxu0 %v971
        %v973 = vpop.f32.mrb[0].mxu0
        %v974 = vadd.f32 %v865, %v973
        %v975 = vpop.f32.mrb[0].mxu0
        %976 = vmatprep.mubr.f32.mxu0 0.0
        %v977 = vand.u32 %v264, 4294901760
        %978 = vmatmul.mubr.f32.gmra.mrb[0].mxu0 %v977
        %v979 = vpop.f32.mrb[0].mxu0
        %v980 = vadd.f32 %v871, %v979
        %v981 = vpop.f32.mrb[0].mxu0
        %982 = vdwg.mxu0
        %v983 = vmax.f32 %v944, 0.0
        %v984 = vmax.f32 %v950, 0.0
        %v985 = vmax.f32 %v956, 0.0
        %v986 = vmax.f32 %v962, 0.0
        %v987 = vmax.f32 %v968, 0.0
        %v988 = vmax.f32 %v974, 0.0
        %v989 = vmax.f32 %v980, 0.0
        %v990 = vrsqrt.pop %v983
        %v991 = vmul.f32 %v983, %v990
        %vm992 = vcmp.eq.f32.partialorder %v983, inf
        %v993 = vsel %vm992, %v983, %v991
        %vm994 = vcmp.eq.f32.partialorder %v983, 0.0
        %v995 = vand.u32 %v983, 2147483648
        %v996 = vsel %vm994, %v995, %v993
        %v997 = vrsqrt.pop %v984
        %v998 = vmul.f32 %v984, %v997
        %vm999 = vcmp.eq.f32.partialorder %v984, inf
        %v1000 = vsel %vm999, %v984, %v998
        %vm1001 = vcmp.eq.f32.partialorder %v984, 0.0
        %v1002 = vand.u32 %v984, 2147483648
        %v1003 = vsel %vm1001, %v1002, %v1000
        %v1004 = vrsqrt.pop %v985
        %v1005 = vmul.f32 %v985, %v1004
        %vm1006 = vcmp.eq.f32.partialorder %v985, inf
        %v1007 = vsel %vm1006, %v985, %v1005
        %vm1008 = vcmp.eq.f32.partialorder %v985, 0.0
        %v1009 = vand.u32 %v985, 2147483648
        %v1010 = vsel %vm1008, %v1009, %v1007
        %v1011 = vrsqrt.pop %v986
        %v1012 = vmul.f32 %v986, %v1011
        %vm1013 = vcmp.eq.f32.partialorder %v986, inf
        %v1014 = vsel %vm1013, %v986, %v1012
        %vm1015 = vcmp.eq.f32.partialorder %v986, 0.0
        %v1016 = vand.u32 %v986, 2147483648
        %v1017 = vsel %vm1015, %v1016, %v1014
        %v1018 = vrsqrt.pop %v987
        %v1019 = vmul.f32 %v987, %v1018
        %vm1020 = vcmp.eq.f32.partialorder %v987, inf
        %v1021 = vsel %vm1020, %v987, %v1019
        %vm1022 = vcmp.eq.f32.partialorder %v987, 0.0
        %v1023 = vand.u32 %v987, 2147483648
        %v1024 = vsel %vm1022, %v1023, %v1021
        %v1025 = vrsqrt.pop %v988
        %v1026 = vmul.f32 %v988, %v1025
        %vm1027 = vcmp.eq.f32.partialorder %v988, inf
        %v1028 = vsel %vm1027, %v988, %v1026
        %vm1029 = vcmp.eq.f32.partialorder %v988, 0.0
        %v1030 = vand.u32 %v988, 2147483648
        %v1031 = vsel %vm1029, %v1030, %v1028
        %v1032 = vrsqrt.pop %v989
        %v1033 = vmul.f32 %v989, %v1032
        %vm1034 = vcmp.eq.f32.partialorder %v989, inf
        %v1035 = vsel %vm1034, %v989, %v1033
        %vm1036 = vcmp.eq.f32.partialorder %v989, 0.0
        %v1037 = vand.u32 %v989, 2147483648
        %v1038 = vsel %vm1036, %v1037, %v1035
        %v1039 = vsub.f32 0.0, %v996
        %v1040 = vsub.f32 0.0, %v1003
        %v1041 = vsub.f32 0.0, %v1010
        %v1042 = vsub.f32 0.0, %v1017
        %v1043 = vsub.f32 0.0, %v1024
        %v1044 = vsub.f32 0.0, %v1031
        %v1045 = vsub.f32 0.0, %v1038
        %v1046 = vmul.f32 %v1039, 0.5
        %v1047 = vmul.f32 %v1040, 0.5
        %v1048 = vmul.f32 %v1041, 0.5
        %v1049 = vmul.f32 %v1042, 0.5
        %v1050 = vmul.f32 %v1043, 0.5
        %v1051 = vmul.f32 %v1044, 0.5
        %v1052 = vmul.f32 %v1045, 0.5
        %v1053 = vmul.f32 %v1046, 1.442695
        %v1054 = vpow.pop %v1053
        %v1055 = vmul.f32 %v1047, 1.442695
        %v1056 = vpow.pop %v1055
        %v1057 = vmul.f32 %v1048, 1.442695
        %v1058 = vpow.pop %v1057
        %v1059 = vmul.f32 %v1049, 1.442695
        %v1060 = vpow.pop %v1059
        %v1061 = vmul.f32 %v1050, 1.442695
        %v1062 = vpow.pop %v1061
        %v1063 = vmul.f32 %v1051, 1.442695
        %v1064 = vpow.pop %v1063
        %v1065 = vmul.f32 %v1052, 1.442695
        %v1066 = vpow.pop %v1065
        %vm1067 = vcmask 408576
        %v1069 = vsel %vm1067, %v207, 0
        %vm1071 = vcmask 1041408
        %v1073 = vsel %vm1071, %v1066, 0
        %1075 = vmatprep.subr.mxu0 0.0
        %v1076 = vand.u32 %v1054, 4294901760
        %1077 = vmatpush1.msra.mxu0 %v1076
        %1078 = vmatprep.subr.mxu0 0.0
        %v1079 = vand.u32 %v1056, 4294901760
        %1080 = vmatpush1.msra.mxu0 %v1079
        %1081 = vmatprep.subr.mxu0 0.0
        %v1082 = vand.u32 %v1058, 4294901760
        %1083 = vmatpush1.msra.mxu0 %v1082
        %1084 = vmatprep.subr.mxu0 0.0
        %v1085 = vand.u32 %v1060, 4294901760
        %1086 = vmatpush1.msra.mxu0 %v1085
        %1087 = vmatprep.subr.mxu0 0.0
        %v1088 = vand.u32 %v1062, 4294901760
        %1089 = vmatpush1.msra.mxu0 %v1088
        %1090 = vmatprep.subr.mxu0 0.0
        %v1091 = vand.u32 %v1064, 4294901760
        %1092 = vmatpush1.msra.mxu0 %v1091
        %1093 = vmatprep.subr.mxu0 0.0
        %v1094 = vand.u32 %v1073, 4294901760
        %1095 = vmatpush1.msra.mxu0 %v1094
        %1096 = vmatprep.subr.mxu0 0.0
        %1097 = vmatpush1.msra.mxu0 0.0
        %1098 = vmatprep.subr.mxu0 0.0
        %1099 = vmatpush1.msra.mxu0 0.0
        %1100 = vmatprep.subr.mxu0 0.0
        %1101 = vmatpush1.msra.mxu0 0.0
        %1102 = vmatprep.subr.mxu0 0.0
        %1103 = vmatpush1.msra.mxu0 0.0
        %1104 = vmatprep.subr.mxu0 0.0
        %1105 = vmatpush1.msra.mxu0 0.0
        %1106 = vmatprep.subr.mxu0 0.0
        %1107 = vmatpush1.msra.mxu0 0.0
        %1108 = vmatprep.subr.mxu0 0.0
        %1109 = vmatpush1.msra.mxu0 0.0
        %1110 = vmatprep.subr.mxu0 0.0
        %1111 = vmatpush1.msra.mxu0 0.0
        %1112 = vmatprep.subr.mxu0 0.0
        %1113 = vmatpush1.msra.mxu0 0.0
        %1114 = vmatprep.subr.mxu0 0.0
        %1115 = vmatpush1.msra.mxu0 0.0
        %1116 = vmatprep.subr.mxu0 0.0
        %1117 = vmatpush1.msra.mxu0 0.0
        %1118 = vmatprep.subr.mxu0 0.0
        %1119 = vmatpush1.msra.mxu0 0.0
        %1120 = vmatprep.subr.mxu0 0.0
        %1121 = vmatpush1.msra.mxu0 0.0
        %1122 = vmatprep.subr.mxu0 0.0
        %1123 = vmatpush1.msra.mxu0 0.0
        %1124 = vmatprep.subr.mxu0 0.0
        %1125 = vmatpush1.msra.mxu0 0.0
        %1126 = vmatprep.subr.mxu0 0.0
        %1127 = vmatpush1.msra.mxu0 0.0
        %1128 = vmatprep.subr.mxu0 0.0
        %1129 = vmatpush1.msra.mxu0 0.0
        %1130 = vmatprep.subr.mxu0 0.0
        %1131 = vmatpush1.msra.mxu0 0.0
        %1132 = vmatprep.subr.mxu0 0.0
        %1133 = vmatpush1.msra.mxu0 0.0
        %1134 = vmatprep.subr.mxu0 0.0
        %1135 = vmatpush1.msra.mxu0 0.0
        %1136 = vmatprep.subr.mxu0 0.0
        %1137 = vmatpush1.msra.mxu0 0.0
        %1138 = vmatprep.subr.mxu0 0.0
        %1139 = vmatpush1.msra.mxu0 0.0
        %1140 = vmatprep.subr.mxu0 0.0
        %1141 = vmatpush1.msra.mxu0 0.0
        %1142 = vmatprep.subr.mxu0 0.0
        %1143 = vmatpush1.msra.mxu0 0.0
        %1144 = vmatprep.subr.mxu0 0.0
        %1145 = vmatpush1.msra.mxu0 0.0
        %1146 = vmatprep.mubr.f32.mxu0 0.0
        %v1147 = vand.u32 %v1069, 4294901760
        %v1148 = vsub.f32 %v1069, %v1147
        %v1149 = vand.u32 %v1148, 4294901760
        %v1150 = vsub.f32 %v1148, %v1149
        %v1151 = vand.u32 %v1150, 4294901760
        %1152 = vmatmul.mubr.f32.gmra.mrb[0].mxu0 %v1151
        %v1153 = vpop.f32.mrb[0].mxu0
        %v1154 = vadd.f32 0.0, %v1153
        %v1155 = vpop.f32.mrb[0].mxu0
        %1156 = vdwg.mxu0
        %1157 = vmatprep.subr.mxu0 0.0
        %v1158 = vand.u32 %v1054, 4294901760
        %v1159 = vsub.f32 %v1054, %v1158
        %v1160 = vand.u32 %v1159, 4294901760
        %v1161 = vsub.f32 %v1159, %v1160
        %v1162 = vand.u32 %v1161, 4294901760
        %1163 = vmatpush1.msra.mxu0 %v1162
        %1164 = vmatprep.subr.mxu0 0.0
        %v1165 = vand.u32 %v1056, 4294901760
        %v1166 = vsub.f32 %v1056, %v1165
        %v1167 = vand.u32 %v1166, 4294901760
        %v1168 = vsub.f32 %v1166, %v1167
        %v1169 = vand.u32 %v1168, 4294901760
        %1170 = vmatpush1.msra.mxu0 %v1169
        %1171 = vmatprep.subr.mxu0 0.0
        %v1172 = vand.u32 %v1058, 4294901760
        %v1173 = vsub.f32 %v1058, %v1172
        %v1174 = vand.u32 %v1173, 4294901760
        %v1175 = vsub.f32 %v1173, %v1174
        %v1176 = vand.u32 %v1175, 4294901760
        %1177 = vmatpush1.msra.mxu0 %v1176
        %1178 = vmatprep.subr.mxu0 0.0
        %v1179 = vand.u32 %v1060, 4294901760
        %v1180 = vsub.f32 %v1060, %v1179
        %v1181 = vand.u32 %v1180, 4294901760
        %v1182 = vsub.f32 %v1180, %v1181
        %v1183 = vand.u32 %v1182, 4294901760
        %1184 = vmatpush1.msra.mxu0 %v1183
        %1185 = vmatprep.subr.mxu0 0.0
        %v1186 = vand.u32 %v1062, 4294901760
        %v1187 = vsub.f32 %v1062, %v1186
        %v1188 = vand.u32 %v1187, 4294901760
        %v1189 = vsub.f32 %v1187, %v1188
        %v1190 = vand.u32 %v1189, 4294901760
        %1191 = vmatpush1.msra.mxu0 %v1190
        %1192 = vmatprep.subr.mxu0 0.0
        %v1193 = vand.u32 %v1064, 4294901760
        %v1194 = vsub.f32 %v1064, %v1193
        %v1195 = vand.u32 %v1194, 4294901760
        %v1196 = vsub.f32 %v1194, %v1195
        %v1197 = vand.u32 %v1196, 4294901760
        %1198 = vmatpush1.msra.mxu0 %v1197
        %1199 = vmatprep.subr.mxu0 0.0
        %v1200 = vand.u32 %v1073, 4294901760
        %v1201 = vsub.f32 %v1073, %v1200
        %v1202 = vand.u32 %v1201, 4294901760
        %v1203 = vsub.f32 %v1201, %v1202
        %v1204 = vand.u32 %v1203, 4294901760
        %1205 = vmatpush1.msra.mxu0 %v1204
        %1206 = vmatprep.subr.mxu0 0.0
        %1207 = vmatpush1.msra.mxu0 0.0
        %1208 = vmatprep.subr.mxu0 0.0
        %1209 = vmatpush1.msra.mxu0 0.0
        %1210 = vmatprep.subr.mxu0 0.0
        %1211 = vmatpush1.msra.mxu0 0.0
        %1212 = vmatprep.subr.mxu0 0.0
        %1213 = vmatpush1.msra.mxu0 0.0
        %1214 = vmatprep.subr.mxu0 0.0
        %1215 = vmatpush1.msra.mxu0 0.0
        %1216 = vmatprep.subr.mxu0 0.0
        %1217 = vmatpush1.msra.mxu0 0.0
        %1218 = vmatprep.subr.mxu0 0.0
        %1219 = vmatpush1.msra.mxu0 0.0
        %1220 = vmatprep.subr.mxu0 0.0
        %1221 = vmatpush1.msra.mxu0 0.0
        %1222 = vmatprep.subr.mxu0 0.0
        %1223 = vmatpush1.msra.mxu0 0.0
        %1224 = vmatprep.subr.mxu0 0.0
        %1225 = vmatpush1.msra.mxu0 0.0
        %1226 = vmatprep.subr.mxu0 0.0
        %1227 = vmatpush1.msra.mxu0 0.0
        %1228 = vmatprep.subr.mxu0 0.0
        %1229 = vmatpush1.msra.mxu0 0.0
        %1230 = vmatprep.subr.mxu0 0.0
        %1231 = vmatpush1.msra.mxu0 0.0
        %1232 = vmatprep.subr.mxu0 0.0
        %1233 = vmatpush1.msra.mxu0 0.0
        %1234 = vmatprep.subr.mxu0 0.0
        %1235 = vmatpush1.msra.mxu0 0.0
        %1236 = vmatprep.subr.mxu0 0.0
        %1237 = vmatpush1.msra.mxu0 0.0
        %1238 = vmatprep.subr.mxu0 0.0
        %1239 = vmatpush1.msra.mxu0 0.0
        %1240 = vmatprep.subr.mxu0 0.0
        %1241 = vmatpush1.msra.mxu0 0.0
        %1242 = vmatprep.subr.mxu0 0.0
        %1243 = vmatpush1.msra.mxu0 0.0
        %1244 = vmatprep.subr.mxu0 0.0
        %1245 = vmatpush1.msra.mxu0 0.0
        %1246 = vmatprep.subr.mxu0 0.0
        %1247 = vmatpush1.msra.mxu0 0.0
        %1248 = vmatprep.subr.mxu0 0.0
        %1249 = vmatpush1.msra.mxu0 0.0
        %1250 = vmatprep.subr.mxu0 0.0
        %1251 = vmatpush1.msra.mxu0 0.0
        %1252 = vmatprep.subr.mxu0 0.0
        %1253 = vmatpush1.msra.mxu0 0.0
        %1254 = vmatprep.subr.mxu0 0.0
        %1255 = vmatpush1.msra.mxu0 0.0
        %1256 = vmatprep.mubr.f32.mxu0 0.0
        %v1257 = vand.u32 %v1069, 4294901760
        %1258 = vmatmul.mubr.f32.gmra.mrb[0].mxu0 %v1257
        %v1259 = vpop.f32.mrb[0].mxu0
        %v1260 = vadd.f32 %v1154, %v1259
        %v1261 = vpop.f32.mrb[0].mxu0
        %1262 = vdwg.mxu0
        %1263 = vmatprep.subr.mxu0 0.0
        %v1264 = vand.u32 %v1054, 4294901760
        %v1265 = vsub.f32 %v1054, %v1264
        %1266 = vmatpush1.msra.mxu0 %v1265
        %1267 = vmatprep.subr.mxu0 0.0
        %v1268 = vand.u32 %v1056, 4294901760
        %v1269 = vsub.f32 %v1056, %v1268
        %1270 = vmatpush1.msra.mxu0 %v1269
        %1271 = vmatprep.subr.mxu0 0.0
        %v1272 = vand.u32 %v1058, 4294901760
        %v1273 = vsub.f32 %v1058, %v1272
        %1274 = vmatpush1.msra.mxu0 %v1273
        %1275 = vmatprep.subr.mxu0 0.0
        %v1276 = vand.u32 %v1060, 4294901760
        %v1277 = vsub.f32 %v1060, %v1276
        %1278 = vmatpush1.msra.mxu0 %v1277
        %1279 = vmatprep.subr.mxu0 0.0
        %v1280 = vand.u32 %v1062, 4294901760
        %v1281 = vsub.f32 %v1062, %v1280
        %1282 = vmatpush1.msra.mxu0 %v1281
        %1283 = vmatprep.subr.mxu0 0.0
        %v1284 = vand.u32 %v1064, 4294901760
        %v1285 = vsub.f32 %v1064, %v1284
        %1286 = vmatpush1.msra.mxu0 %v1285
        %1287 = vmatprep.subr.mxu0 0.0
        %v1288 = vand.u32 %v1073, 4294901760
        %v1289 = vsub.f32 %v1073, %v1288
        %1290 = vmatpush1.msra.mxu0 %v1289
        %1291 = vmatprep.subr.mxu0 0.0
        %1292 = vmatpush1.msra.mxu0 0.0
        %1293 = vmatprep.subr.mxu0 0.0
        %1294 = vmatpush1.msra.mxu0 0.0
        %1295 = vmatprep.subr.mxu0 0.0
        %1296 = vmatpush1.msra.mxu0 0.0
        %1297 = vmatprep.subr.mxu0 0.0
        %1298 = vmatpush1.msra.mxu0 0.0
        %1299 = vmatprep.subr.mxu0 0.0
        %1300 = vmatpush1.msra.mxu0 0.0
        %1301 = vmatprep.subr.mxu0 0.0
        %1302 = vmatpush1.msra.mxu0 0.0
        %1303 = vmatprep.subr.mxu0 0.0
        %1304 = vmatpush1.msra.mxu0 0.0
        %1305 = vmatprep.subr.mxu0 0.0
        %1306 = vmatpush1.msra.mxu0 0.0
        %1307 = vmatprep.subr.mxu0 0.0
        %1308 = vmatpush1.msra.mxu0 0.0
        %1309 = vmatprep.subr.mxu0 0.0
        %1310 = vmatpush1.msra.mxu0 0.0
        %1311 = vmatprep.subr.mxu0 0.0
        %1312 = vmatpush1.msra.mxu0 0.0
        %1313 = vmatprep.subr.mxu0 0.0
        %1314 = vmatpush1.msra.mxu0 0.0
        %1315 = vmatprep.subr.mxu0 0.0
        %1316 = vmatpush1.msra.mxu0 0.0
        %1317 = vmatprep.subr.mxu0 0.0
        %1318 = vmatpush1.msra.mxu0 0.0
        %1319 = vmatprep.subr.mxu0 0.0
        %1320 = vmatpush1.msra.mxu0 0.0
        %1321 = vmatprep.subr.mxu0 0.0
        %1322 = vmatpush1.msra.mxu0 0.0
        %1323 = vmatprep.subr.mxu0 0.0
        %1324 = vmatpush1.msra.mxu0 0.0
        %1325 = vmatprep.subr.mxu0 0.0
        %1326 = vmatpush1.msra.mxu0 0.0
        %1327 = vmatprep.subr.mxu0 0.0
        %1328 = vmatpush1.msra.mxu0 0.0
        %1329 = vmatprep.subr.mxu0 0.0
        %1330 = vmatpush1.msra.mxu0 0.0
        %1331 = vmatprep.subr.mxu0 0.0
        %1332 = vmatpush1.msra.mxu0 0.0
        %1333 = vmatprep.subr.mxu0 0.0
        %1334 = vmatpush1.msra.mxu0 0.0
        %1335 = vmatprep.subr.mxu0 0.0
        %1336 = vmatpush1.msra.mxu0 0.0
        %1337 = vmatprep.subr.mxu0 0.0
        %1338 = vmatpush1.msra.mxu0 0.0
        %1339 = vmatprep.subr.mxu0 0.0
        %1340 = vmatpush1.msra.mxu0 0.0
        %1341 = vmatprep.mubr.f32.mxu0 0.0
        %v1342 = vand.u32 %v1069, 4294901760
        %v1343 = vsub.f32 %v1069, %v1342
        %1344 = vmatmul.mubr.f32.gmra.mrb[0].mxu0 %v1343
        %v1345 = vpop.f32.mrb[0].mxu0
        %v1346 = vadd.f32 %v1260, %v1345
        %v1347 = vpop.f32.mrb[0].mxu0
        %1348 = vdwg.mxu0
        %1349 = vmatprep.subr.mxu0 0.0
        %v1350 = vand.u32 %v1054, 4294901760
        %1351 = vmatpush1.msra.mxu0 %v1350
        %1352 = vmatprep.subr.mxu0 0.0
        %v1353 = vand.u32 %v1056, 4294901760
        %1354 = vmatpush1.msra.mxu0 %v1353
        %1355 = vmatprep.subr.mxu0 0.0
        %v1356 = vand.u32 %v1058, 4294901760
        %1357 = vmatpush1.msra.mxu0 %v1356
        %1358 = vmatprep.subr.mxu0 0.0
        %v1359 = vand.u32 %v1060, 4294901760
        %1360 = vmatpush1.msra.mxu0 %v1359
        %1361 = vmatprep.subr.mxu0 0.0
        %v1362 = vand.u32 %v1062, 4294901760
        %1363 = vmatpush1.msra.mxu0 %v1362
        %1364 = vmatprep.subr.mxu0 0.0
        %v1365 = vand.u32 %v1064, 4294901760
        %1366 = vmatpush1.msra.mxu0 %v1365
        %1367 = vmatprep.subr.mxu0 0.0
        %v1368 = vand.u32 %v1073, 4294901760
        %1369 = vmatpush1.msra.mxu0 %v1368
        %1370 = vmatprep.subr.mxu0 0.0
        %1371 = vmatpush1.msra.mxu0 0.0
        %1372 = vmatprep.subr.mxu0 0.0
        %1373 = vmatpush1.msra.mxu0 0.0
        %1374 = vmatprep.subr.mxu0 0.0
        %1375 = vmatpush1.msra.mxu0 0.0
        %1376 = vmatprep.subr.mxu0 0.0
        %1377 = vmatpush1.msra.mxu0 0.0
        %1378 = vmatprep.subr.mxu0 0.0
        %1379 = vmatpush1.msra.mxu0 0.0
        %1380 = vmatprep.subr.mxu0 0.0
        %1381 = vmatpush1.msra.mxu0 0.0
        %1382 = vmatprep.subr.mxu0 0.0
        %1383 = vmatpush1.msra.mxu0 0.0
        %1384 = vmatprep.subr.mxu0 0.0
        %1385 = vmatpush1.msra.mxu0 0.0
        %1386 = vmatprep.subr.mxu0 0.0
        %1387 = vmatpush1.msra.mxu0 0.0
        %1388 = vmatprep.subr.mxu0 0.0
        %1389 = vmatpush1.msra.mxu0 0.0
        %1390 = vmatprep.subr.mxu0 0.0
        %1391 = vmatpush1.msra.mxu0 0.0
        %1392 = vmatprep.subr.mxu0 0.0
        %1393 = vmatpush1.msra.mxu0 0.0
        %1394 = vmatprep.subr.mxu0 0.0
        %1395 = vmatpush1.msra.mxu0 0.0
        %1396 = vmatprep.subr.mxu0 0.0
        %1397 = vmatpush1.msra.mxu0 0.0
        %1398 = vmatprep.subr.mxu0 0.0
        %1399 = vmatpush1.msra.mxu0 0.0
        %1400 = vmatprep.subr.mxu0 0.0
        %1401 = vmatpush1.msra.mxu0 0.0
        %1402 = vmatprep.subr.mxu0 0.0
        %1403 = vmatpush1.msra.mxu0 0.0
        %1404 = vmatprep.subr.mxu0 0.0
        %1405 = vmatpush1.msra.mxu0 0.0
        %1406 = vmatprep.subr.mxu0 0.0
        %1407 = vmatpush1.msra.mxu0 0.0
        %1408 = vmatprep.subr.mxu0 0.0
        %1409 = vmatpush1.msra.mxu0 0.0
        %1410 = vmatprep.subr.mxu0 0.0
        %1411 = vmatpush1.msra.mxu0 0.0
        %1412 = vmatprep.subr.mxu0 0.0
        %1413 = vmatpush1.msra.mxu0 0.0
        %1414 = vmatprep.subr.mxu0 0.0
        %1415 = vmatpush1.msra.mxu0 0.0
        %1416 = vmatprep.subr.mxu0 0.0
        %1417 = vmatpush1.msra.mxu0 0.0
        %1418 = vmatprep.subr.mxu0 0.0
        %1419 = vmatpush1.msra.mxu0 0.0
        %1420 = vmatprep.mubr.f32.mxu0 0.0
        %v1421 = vand.u32 %v1069, 4294901760
        %v1422 = vsub.f32 %v1069, %v1421
        %v1423 = vand.u32 %v1422, 4294901760
        %1424 = vmatmul.mubr.f32.gmra.mrb[0].mxu0 %v1423
        %v1425 = vpop.f32.mrb[0].mxu0
        %v1426 = vadd.f32 %v1346, %v1425
        %v1427 = vpop.f32.mrb[0].mxu0
        %1428 = vdwg.mxu0
        %1429 = vmatprep.subr.mxu0 0.0
        %v1430 = vand.u32 %v1054, 4294901760
        %v1431 = vsub.f32 %v1054, %v1430
        %v1432 = vand.u32 %v1431, 4294901760
        %1433 = vmatpush1.msra.mxu0 %v1432
        %1434 = vmatprep.subr.mxu0 0.0
        %v1435 = vand.u32 %v1056, 4294901760
        %v1436 = vsub.f32 %v1056, %v1435
        %v1437 = vand.u32 %v1436, 4294901760
        %1438 = vmatpush1.msra.mxu0 %v1437
        %1439 = vmatprep.subr.mxu0 0.0
        %v1440 = vand.u32 %v1058, 4294901760
        %v1441 = vsub.f32 %v1058, %v1440
        %v1442 = vand.u32 %v1441, 4294901760
        %1443 = vmatpush1.msra.mxu0 %v1442
        %1444 = vmatprep.subr.mxu0 0.0
        %v1445 = vand.u32 %v1060, 4294901760
        %v1446 = vsub.f32 %v1060, %v1445
        %v1447 = vand.u32 %v1446, 4294901760
        %1448 = vmatpush1.msra.mxu0 %v1447
        %1449 = vmatprep.subr.mxu0 0.0
        %v1450 = vand.u32 %v1062, 4294901760
        %v1451 = vsub.f32 %v1062, %v1450
        %v1452 = vand.u32 %v1451, 4294901760
        %1453 = vmatpush1.msra.mxu0 %v1452
        %1454 = vmatprep.subr.mxu0 0.0
        %v1455 = vand.u32 %v1064, 4294901760
        %v1456 = vsub.f32 %v1064, %v1455
        %v1457 = vand.u32 %v1456, 4294901760
        %1458 = vmatpush1.msra.mxu0 %v1457
        %1459 = vmatprep.subr.mxu0 0.0
        %v1460 = vand.u32 %v1073, 4294901760
        %v1461 = vsub.f32 %v1073, %v1460
        %v1462 = vand.u32 %v1461, 4294901760
        %1463 = vmatpush1.msra.mxu0 %v1462
        %1464 = vmatprep.subr.mxu0 0.0
        %1465 = vmatpush1.msra.mxu0 0.0
        %1466 = vmatprep.subr.mxu0 0.0
        %1467 = vmatpush1.msra.mxu0 0.0
        %1468 = vmatprep.subr.mxu0 0.0
        %1469 = vmatpush1.msra.mxu0 0.0
        %1470 = vmatprep.subr.mxu0 0.0
        %1471 = vmatpush1.msra.mxu0 0.0
        %1472 = vmatprep.subr.mxu0 0.0
        %1473 = vmatpush1.msra.mxu0 0.0
        %1474 = vmatprep.subr.mxu0 0.0
        %1475 = vmatpush1.msra.mxu0 0.0
        %1476 = vmatprep.subr.mxu0 0.0
        %1477 = vmatpush1.msra.mxu0 0.0
        %1478 = vmatprep.subr.mxu0 0.0
        %1479 = vmatpush1.msra.mxu0 0.0
        %1480 = vmatprep.subr.mxu0 0.0
        %1481 = vmatpush1.msra.mxu0 0.0
        %1482 = vmatprep.subr.mxu0 0.0
        %1483 = vmatpush1.msra.mxu0 0.0
        %1484 = vmatprep.subr.mxu0 0.0
        %1485 = vmatpush1.msra.mxu0 0.0
        %1486 = vmatprep.subr.mxu0 0.0
        %1487 = vmatpush1.msra.mxu0 0.0
        %1488 = vmatprep.subr.mxu0 0.0
        %1489 = vmatpush1.msra.mxu0 0.0
        %1490 = vmatprep.subr.mxu0 0.0
        %1491 = vmatpush1.msra.mxu0 0.0
        %1492 = vmatprep.subr.mxu0 0.0
        %1493 = vmatpush1.msra.mxu0 0.0
        %1494 = vmatprep.subr.mxu0 0.0
        %1495 = vmatpush1.msra.mxu0 0.0
        %1496 = vmatprep.subr.mxu0 0.0
        %1497 = vmatpush1.msra.mxu0 0.0
        %1498 = vmatprep.subr.mxu0 0.0
        %1499 = vmatpush1.msra.mxu0 0.0
        %1500 = vmatprep.subr.mxu0 0.0
        %1501 = vmatpush1.msra.mxu0 0.0
        %1502 = vmatprep.subr.mxu0 0.0
        %1503 = vmatpush1.msra.mxu0 0.0
        %1504 = vmatprep.subr.mxu0 0.0
        %1505 = vmatpush1.msra.mxu0 0.0
        %1506 = vmatprep.subr.mxu0 0.0
        %1507 = vmatpush1.msra.mxu0 0.0
        %1508 = vmatprep.subr.mxu0 0.0
        %1509 = vmatpush1.msra.mxu0 0.0
        %1510 = vmatprep.subr.mxu0 0.0
        %1511 = vmatpush1.msra.mxu0 0.0
        %1512 = vmatprep.subr.mxu0 0.0
        %1513 = vmatpush1.msra.mxu0 0.0
        %1514 = vmatprep.mubr.f32.mxu0 0.0
        %v1515 = vand.u32 %v1069, 4294901760
        %1516 = vmatmul.mubr.f32.gmra.mrb[0].mxu0 %v1515
        %v1517 = vpop.f32.mrb[0].mxu0
        %v1518 = vadd.f32 %v1426, %v1517
        %v1519 = vpop.f32.mrb[0].mxu0
        %1520 = vdwg.mxu0
        %1521 = vmatprep.subr.mxu0 0.0
        %v1522 = vand.u32 %v1054, 4294901760
        %1523 = vmatpush1.msra.mxu0 %v1522
        %1524 = vmatprep.subr.mxu0 0.0
        %v1525 = vand.u32 %v1056, 4294901760
        %1526 = vmatpush1.msra.mxu0 %v1525
        %1527 = vmatprep.subr.mxu0 0.0
        %v1528 = vand.u32 %v1058, 4294901760
        %1529 = vmatpush1.msra.mxu0 %v1528
        %1530 = vmatprep.subr.mxu0 0.0
        %v1531 = vand.u32 %v1060, 4294901760
        %1532 = vmatpush1.msra.mxu0 %v1531
        %1533 = vmatprep.subr.mxu0 0.0
        %v1534 = vand.u32 %v1062, 4294901760
        %1535 = vmatpush1.msra.mxu0 %v1534
        %1536 = vmatprep.subr.mxu0 0.0
        %v1537 = vand.u32 %v1064, 4294901760
        %1538 = vmatpush1.msra.mxu0 %v1537
        %1539 = vmatprep.subr.mxu0 0.0
        %v1540 = vand.u32 %v1073, 4294901760
        %1541 = vmatpush1.msra.mxu0 %v1540
        %1542 = vmatprep.subr.mxu0 0.0
        %1543 = vmatpush1.msra.mxu0 0.0
        %1544 = vmatprep.subr.mxu0 0.0
        %1545 = vmatpush1.msra.mxu0 0.0
        %1546 = vmatprep.subr.mxu0 0.0
        %1547 = vmatpush1.msra.mxu0 0.0
        %1548 = vmatprep.subr.mxu0 0.0
        %1549 = vmatpush1.msra.mxu0 0.0
        %1550 = vmatprep.subr.mxu0 0.0
        %1551 = vmatpush1.msra.mxu0 0.0
        %1552 = vmatprep.subr.mxu0 0.0
        %1553 = vmatpush1.msra.mxu0 0.0
        %1554 = vmatprep.subr.mxu0 0.0
        %1555 = vmatpush1.msra.mxu0 0.0
        %1556 = vmatprep.subr.mxu0 0.0
        %1557 = vmatpush1.msra.mxu0 0.0
        %1558 = vmatprep.subr.mxu0 0.0
        %1559 = vmatpush1.msra.mxu0 0.0
        %1560 = vmatprep.subr.mxu0 0.0
        %1561 = vmatpush1.msra.mxu0 0.0
        %1562 = vmatprep.subr.mxu0 0.0
        %1563 = vmatpush1.msra.mxu0 0.0
        %1564 = vmatprep.subr.mxu0 0.0
        %1565 = vmatpush1.msra.mxu0 0.0
        %1566 = vmatprep.subr.mxu0 0.0
        %1567 = vmatpush1.msra.mxu0 0.0
        %1568 = vmatprep.subr.mxu0 0.0
        %1569 = vmatpush1.msra.mxu0 0.0
        %1570 = vmatprep.subr.mxu0 0.0
        %1571 = vmatpush1.msra.mxu0 0.0
        %1572 = vmatprep.subr.mxu0 0.0
        %1573 = vmatpush1.msra.mxu0 0.0
        %1574 = vmatprep.subr.mxu0 0.0
        %1575 = vmatpush1.msra.mxu0 0.0
        %1576 = vmatprep.subr.mxu0 0.0
        %1577 = vmatpush1.msra.mxu0 0.0
        %1578 = vmatprep.subr.mxu0 0.0
        %1579 = vmatpush1.msra.mxu0 0.0
        %1580 = vmatprep.subr.mxu0 0.0
        %1581 = vmatpush1.msra.mxu0 0.0
        %1582 = vmatprep.subr.mxu0 0.0
        %1583 = vmatpush1.msra.mxu0 0.0
        %1584 = vmatprep.subr.mxu0 0.0
        %1585 = vmatpush1.msra.mxu0 0.0
        %1586 = vmatprep.subr.mxu0 0.0
        %1587 = vmatpush1.msra.mxu0 0.0
        %1588 = vmatprep.subr.mxu0 0.0
        %1589 = vmatpush1.msra.mxu0 0.0
        %1590 = vmatprep.subr.mxu0 0.0
        %1591 = vmatpush1.msra.mxu0 0.0
        %1592 = vmatprep.mubr.f32.mxu0 0.0
        %v1593 = vand.u32 %v1069, 4294901760
        %1594 = vmatmul.mubr.f32.gmra.mrb[0].mxu0 %v1593
        %v1595 = vpop.f32.mrb[0].mxu0
        %v1596 = vadd.f32 %v1518, %v1595
        %v1597 = vpop.f32.mrb[0].mxu0
        %1598 = vdwg.mxu0
        %1599 = vst [vmem:[%s187] sm:$0x1] %v1596
        %s1600 = sand.u32 %s115, 1
        %s1601 = scalar_lea.sflag [#allocation3], %s1600
        %s1602 = sand.u32 %s115, 1
        %s1603 = scalar_lea.vmem [#allocation2], %s1602
        // Predicated region
        $region37: #{tpu_custom_call.1} parent=35 // pred_check
          %p1604 = pneg %p125
        $region38: #{tpu_custom_call.1} parent=35 // pred_check_branch
          %1606 = sbr.rel (%p1604) target = $region40
        $region39: #{tpu_custom_call.1} parent=35 // pred_region
          %s1608 = ssub.s32 16, 16
          %1609 = vsyncadd %s1601, %s1608
          %s1610 = smul.addr %s18, 16
          %s1611 = scalar_lea.hbm %s4, %s1610
          %s1613 = sshll.u32 %s1603, 4
          %s1614 = int_to_ptr.vmem [resolvable:$true] %s1613
          %1616 = dma.vmem_to_hbm [thread:$0]  %s1614, 16, %s1611, %s1601
        $region40: #{tpu_custom_call.1} parent=35 // pred_fallthru
          _
      $region36: #{tpu_custom_call.1} parent=5 // pred_fallthru
        _
      %p1617 = scmp.le.s32.totalorder 2, %s13
      // Predicated region
      $region41: #{tpu_custom_call.1} parent=5 // pred_check
        %p1618 = pneg %p1617
      $region42: #{tpu_custom_call.1} parent=5 // pred_check_branch
        %1620 = sbr.rel (%p1618) target = $region44
      $region43: #{tpu_custom_call.1} parent=5 // pred_region
        %s1621 = ssub.s32 %s13, 2
        // Predicated region
        $region45: #{tpu_custom_call.1} parent=43 // pred_check
          %p1622 = pneg %p131
        $region46: #{tpu_custom_call.1} parent=43 // pred_check_branch
          %1624 = sbr.rel (%p1622) target = $region48
        $region47: #{tpu_custom_call.1} parent=43 // pred_region
          %s1625 = sand.u32 %s116, 1
          %s1626 = scalar_lea.sflag [#allocation3], %s1625
          %s1627 = sand.u32 %s116, 1
          %s1628 = scalar_lea.vmem [#allocation2], %s1627
          %1629 = dma.done %s1626, 16
        $region48: #{tpu_custom_call.1} parent=43 // pred_fallthru
          _
      $region44: #{tpu_custom_call.1} parent=5 // pred_fallthru
        _
    $region6: #{tpu_custom_call.1} parent=1 // loop_footer
      %s17 = sadd.s32 1, %s13
    $region7: #{tpu_custom_call.1} parent=1 // loop_footer_branch
      %12 = sbr.rel target = $region3
    $region8: #{tpu_custom_call.1} parent=1 // loop_exit
      _
    %1630 = vsyncpa [#allocation3], 1
    %s1631 = scalar_lea.sflag [#allocation3], 1
    %1632 = vsyncpa %s1631, 1

</llo_original>
